<compile_context>
chip_gen: v7x
topology: tpu7x:2x2x1
jax: 0.10.0
libtpu: 0.0.40
codegen_flags: <defaults>
</compile_context>

<pallas_src>
import functools

import jax
import jax.numpy as jnp
from jax.experimental import pallas as pl
from jax.experimental.pallas import tpu as pltpu


def _round_up(x, m):
    return ((x + m - 1) // m) * m


def _cdiv(a, b):
    return (a + b - 1) // b


# ---------------------------------------------------------------------------
# Kernels
# ---------------------------------------------------------------------------
def _mlp_fused_kernel(x_ref, w1_ref, b1_ref, w2_ref, b2_ref, w3_ref, b3_ref, o_ref,
                      *, compute_dtype):
    """All three layers fused; weights fully VMEM-resident; one row-tile per grid step."""
    # f32 -> bf16 cast of the input happens here on the VPU (no wrapper-side HBM pass).
    x = x_ref[...].astype(compute_dtype)
    h = jnp.dot(x, w1_ref[...], preferred_element_type=jnp.float32)
    h = jnp.maximum(h + b1_ref[...], 0.0)   # bias+ReLU kept in f32 (intentional: v5e VPU has no bf16)
    h = jnp.dot(h.astype(compute_dtype), w2_ref[...], preferred_element_type=jnp.float32)
    h = jnp.maximum(h + b2_ref[...], 0.0)
    h = jnp.dot(h.astype(compute_dtype), w3_ref[...], preferred_element_type=jnp.float32)
    o_ref[...] = jnp.maximum(h + b3_ref[...], 0.0).astype(o_ref.dtype)


def _mlp_ktiled_kernel(x_ref, w1_ref, b1_ref, w2_ref, b2_ref, w3_ref, b3_ref, o_ref,
                       acc_ref, *, compute_dtype):
    """Fallback when W1 is too large to keep VMEM-resident: layer-1 is accumulated over
    Din chunks on the inner ('arbitrary') grid axis; layers 2/3 run on the last chunk."""
    k = pl.program_id(1)

    @pl.when(k == 0)
    def _():
        acc_ref[...] = jnp.zeros_like(acc_ref)

    xk = x_ref[...].astype(compute_dtype)
    acc_ref[...] += jnp.dot(xk, w1_ref[...], preferred_element_type=jnp.float32)

    @pl.when(k == pl.num_programs(1) - 1)
    def _():
        h = jnp.maximum(acc_ref[...] + b1_ref[...], 0.0)
        h = jnp.dot(h.astype(compute_dtype), w2_ref[...], preferred_element_type=jnp.float32)
        h = jnp.maximum(h + b2_ref[...], 0.0)
        h = jnp.dot(h.astype(compute_dtype), w3_ref[...], preferred_element_type=jnp.float32)
        o_ref[...] = jnp.maximum(h + b3_ref[...], 0.0).astype(o_ref.dtype)


# ---------------------------------------------------------------------------
# Wrapper
# ---------------------------------------------------------------------------
def mlp_encoder(x, params, *, tile_m=512, din_tile=None, compute_dtype=jnp.bfloat16):
    """x: [N, input_dim] f32; params: w1,b1,w2,b2,w3,b3 (w as [in,out], b as [1,out]).

    Returns [N, latent_dim] f32, matching the (eval-mode) PyTorch MLPEncoder forward.
    """
    assert tile_m % 8 == 0
    N, Din = x.shape
    H1 = params["w1"].shape[1]
    H2 = params["w2"].shape[1]
    Dout = params["w3"].shape[1]
    itm = jnp.dtype(compute_dtype).itemsize

    # --- VMEM budget: physical capacity minus Mosaic scratch/semaphore headroom. -------
    try:
        phys_vmem = int(pltpu.get_tpu_info().vmem_capacity_bytes)  # 128 MiB v5e/v6e, 64 MiB v7x
    except Exception:
        phys_vmem = 64 << 20                                       # conservative (v7x) default
    vmem_cap = max(phys_vmem - (12 << 20), 24 << 20)

    # --- Decide whether layer-1 needs Din tiling (W1 not fully VMEM-resident). ---------
    if din_tile is None and Din * H1 * itm > vmem_cap // 3:
        din_tile = 512
    use_ktile = din_tile is not None
    if use_ktile:
        assert din_tile % 128 == 0, "din_tile must be a multiple of 128 (lane width)"

    # --- Row tiling: balance tile against step count (minimal padding); keep the step
    # count even when possible so both v7x TensorCores get work. ------------------------
    steps = _cdiv(N, tile_m)
    if N >= 16:
        if steps == 1:
            steps = 2
        elif steps % 2 == 1:
            steps += 1
    tile_m_eff = _round_up(_cdiv(N, steps), 8)

    # --- Shrink the row tile if the footprint would not fit the VMEM budget. -----------
    def footprint(tm):
        kdim = din_tile if use_ktile else Din
        w_bytes = (kdim * H1 + H1 * H2 + H2 * Dout) * itm + (H1 + H2 + Dout) * 4
        if use_ktile:
            w_bytes += kdim * H1 * itm           # W1 chunks vary with k -> double-buffered
        x_tiles = 2 * tm * kdim * 4              # f32 input tiles, double-buffered
        o_tiles = 2 * tm * Dout * 4              # f32 output tiles, double-buffered
        inter = tm * (H1 + H2) * 4               # f32 intermediates / accumulator
        return w_bytes + x_tiles + o_tiles + inter

    while footprint(tile_m_eff) > vmem_cap and tile_m_eff > 8:
        tile_m_eff = max(8, _round_up(tile_m_eff // 2, 8))

    grid_m = _cdiv(N, tile_m_eff)
    N_pad = grid_m * tile_m_eff

    # --- Prepare operands (weights cast once to the MXU dtype; x stays f32). -----------
    x_p = x if N_pad == N else jnp.pad(x, ((0, N_pad - N), (0, 0)))
    w1 = params["w1"]
    if use_ktile:
        Din_pad = _round_up(Din, din_tile)
        if Din_pad != Din:
            x_p = jnp.pad(x_p, ((0, 0), (0, Din_pad - Din)))
            w1 = jnp.pad(w1, ((0, Din_pad - Din), (0, 0)))
    else:
        Din_pad = Din
    w1 = w1.astype(compute_dtype)
    w2 = params["w2"].astype(compute_dtype)
    w3 = params["w3"].astype(compute_dtype)
    b1 = params["b1"].astype(jnp.float32)
    b2 = params["b2"].astype(jnp.float32)
    b3 = params["b3"].astype(jnp.float32)

    vmem_limit = int(min(max(footprint(tile_m_eff) * 1.3 + (2 << 20), 32 << 20), vmem_cap))

    flops = 2 * N_pad * (Din_pad * H1 + H1 * H2 + H2 * Dout)
    bytes_accessed = (N_pad * Din_pad * 4
                      + (Din_pad * H1 + H1 * H2 + H2 * Dout) * itm
                      + (H1 + H2 + Dout) * 4
                      + N_pad * Dout * 4)
    cost = pl.CostEstimate(flops=flops, transcendentals=0, bytes_accessed=bytes_accessed)

    def run(single_buffer_weights):
        def const_spec(shape):
            idx = lambda *_: (0,) * len(shape)                     # grid-invariant
            if single_buffer_weights:
                return pl.BlockSpec(shape, idx, pipeline_mode=pl.Buffered(1))
            return pl.BlockSpec(shape, idx)

        if use_ktile:
            kernel = functools.partial(_mlp_ktiled_kernel, compute_dtype=compute_dtype)
            grid = (grid_m, Din_pad // din_tile)
            in_specs = [
                pl.BlockSpec((tile_m_eff, din_tile), lambda i, k: (i, k)),  # x (f32) row/K tile
                pl.BlockSpec((din_tile, H1), lambda i, k: (k, 0)),          # W1 chunk (bf16)
                const_spec((1, H1)),
                const_spec((H1, H2)),
                const_spec((1, H2)),
                const_spec((H2, Dout)),
                const_spec((1, Dout)),
            ]
            out_spec = pl.BlockSpec((tile_m_eff, Dout), lambda i, k: (i, 0))
            scratch = [pltpu.VMEM((tile_m_eff, H1), jnp.float32)]
            semantics = ("parallel", "arbitrary")
        else:
            kernel = functools.partial(_mlp_fused_kernel, compute_dtype=compute_dtype)
            grid = (grid_m,)
            in_specs = [
                pl.BlockSpec((tile_m_eff, Din), lambda i: (i, 0)),          # x (f32) row tile
                const_spec((Din, H1)),
                const_spec((1, H1)),
                const_spec((H1, H2)),
                const_spec((1, H2)),
                const_spec((H2, Dout)),
                const_spec((1, Dout)),
            ]
            out_spec = pl.BlockSpec((tile_m_eff, Dout), lambda i: (i, 0))
            scratch = []
            semantics = ("parallel",)

        return pl.pallas_call(
            kernel,
            out_shape=jax.ShapeDtypeStruct((N_pad, Dout), jnp.float32),
            grid_spec=pltpu.PrefetchScalarGridSpec(
                num_scalar_prefetch=0,
                grid=grid,
                in_specs=in_specs,
                out_specs=out_spec,
                scratch_shapes=scratch,
            ),
            compiler_params=pltpu.CompilerParams(
                dimension_semantics=semantics,
                vmem_limit_bytes=vmem_limit,
            ),
            cost_estimate=cost,
        )(x_p, w1, b1, w2, b2, w3, b3)

    try:
        out = run(single_buffer_weights=True)
    except Exception:
        # Older jax without BlockSpec.pipeline_mode / Buffered(1): fall back to default
        # double-buffered weight specs (slightly more VMEM, same results).
        out = run(single_buffer_weights=False)

    # Columns are already exactly Dout; only slice rows, and only if padding was needed.
    return out if N_pad == N else out[:N]


# ---------------------------------------------------------------------------
# Parameter init + pure-JAX reference (matches PyTorch layer sizing / eval semantics)
# ---------------------------------------------------------------------------
def init_params(key, input_dim, latent_dim, layer_ratio, n_conv_layers):
    """Deterministic init matching the PyTorch module's layer sizes (n_conv_layers == 3):
    hidden1 = latent_dim * ratio^(L-1), hidden2 = latent_dim * ratio^(L-2), out = latent_dim."""
    assert n_conv_layers == 3
    hidden1 = int(latent_dim * (layer_ratio ** (n_conv_layers - 1)))
    hidden2 = int(latent_dim * (layer_ratio ** (n_conv_layers - 2)))
    dims = [(input_dim, hidden1), (hidden1, hidden2), (hidden2, latent_dim)]
    params = {}
    for idx, (din, dout) in enumerate(dims, start=1):
        key, kw, kb = jax.random.split(key, 3)
        bound = 1.0 / (din ** 0.5)   # torch.nn.Linear default uniform(-1/sqrt(in), 1/sqrt(in))
        params[f"w{idx}"] = jax.random.uniform(kw, (din, dout), jnp.float32, -bound, bound)
        params[f"b{idx}"] = jax.random.uniform(kb, (1, dout), jnp.float32, -bound, bound)
    return params


def reference_forward(x, params, compute_dtype=jnp.bfloat16):
    """Pure-JAX reference with the same bf16-input / f32-accumulate numerics as the kernel.
    Note: the PyTorch module applies activation (ReLU) after EVERY Linear, incl. the last."""
    def q(v):  # round through the matmul compute dtype, math in f32
        return v.astype(compute_dtype).astype(jnp.float32)
    h = jnp.maximum(q(x) @ q(params["w1"]) + params["b1"], 0.0)
    h = jnp.maximum(q(h) @ q(params["w2"]) + params["b2"], 0.0)
    return jnp.maximum(q(h) @ q(params["w3"]) + params["b3"], 0.0)


if __name__ == "__main__":
    # Opts: n_conv_layers=3, latent_dim=32, layer_ratio=2, activation=ReLU,
    # dropout (eval -> identity).  N=512 -> 2 grid steps (keeps both v7x TCs busy).
    key = jax.random.PRNGKey(0)
    key, kx = jax.random.split(key)

    num_nodes, input_dim = 512, 64
    latent_dim, layer_ratio, n_conv_layers = 32, 2, 3

    x = jax.random.normal(kx, (num_nodes, input_dim), jnp.float32)
    edge_index = jnp.zeros((2, 4), jnp.int32)  # accepted but unused by MLPEncoder.forward

    params = init_params(key, input_dim, latent_dim, layer_ratio, n_conv_layers)

    # TODO(synk): Dropout implemented as identity (inference/eval semantics); training-mode
    # stochastic dropout would need pltpu.prng_seed / prng_random_bits plus a train flag
    # that the PyTorch forward() does not expose.
    out = jax.block_until_ready(mlp_encoder(x, params))
    ref = reference_forward(x, params)
    assert out.shape == (num_nodes, latent_dim)
    assert out.dtype == jnp.float32
    assert jnp.allclose(out, ref, atol=2e-3, rtol=2e-3), float(jnp.max(jnp.abs(out - ref)))

    # Also exercise the Din-tiled fallback path (used automatically when W1 would not fit
    # the VMEM budget) on a small forced example so it stays correct.
    key, kx2, kp2 = jax.random.split(key, 3)
    x2 = jax.random.normal(kx2, (192, 256), jnp.float32)
    params2 = init_params(kp2, 256, latent_dim, layer_ratio, n_conv_layers)
    out2 = jax.block_until_ready(mlp_encoder(x2, params2, din_tile=128))
    ref2 = reference_forward(x2, params2)
    assert out2.shape == (192, latent_dim)
    assert jnp.allclose(out2, ref2, atol=2e-3, rtol=2e-3), float(jnp.max(jnp.abs(out2 - ref2)))

    print("KERNEL_OK")
</pallas_src>

<mosaic_0001>
module attributes {stable_mosaic.version = 11 : i64} {
  func.func @_mlp_fused_kernel(%arg0: i32, %arg1: memref<256x64xf32, #tpu.memory_space<vmem>>, %arg2: memref<64x128xbf16, #tpu.memory_space<vmem>>, %arg3: memref<1x128xf32, #tpu.memory_space<vmem>>, %arg4: memref<128x64xbf16, #tpu.memory_space<vmem>>, %arg5: memref<1x64xf32, #tpu.memory_space<vmem>>, %arg6: memref<64x32xbf16, #tpu.memory_space<vmem>>, %arg7: memref<1x32xf32, #tpu.memory_space<vmem>>, %arg8: memref<256x32xf32, #tpu.memory_space<vmem>>) attributes {dimension_semantics = [#tpu.dimension_semantics<parallel>], iteration_bounds = array<i64: 2>, scalar_prefetch = 0 : i64, scratch_operands = 0 : i64, tpu.core_type = #tpu.core_type<tc>, window_params = [{transform_indices = @transform_0, window_bounds = array<i64: 256, 64>}, {pipeline_mode = #tpu.pipeline_mode<synchronous>, transform_indices = @transform_1, window_bounds = array<i64: 64, 128>}, {pipeline_mode = #tpu.pipeline_mode<synchronous>, transform_indices = @transform_2, window_bounds = array<i64: 1, 128>}, {pipeline_mode = #tpu.pipeline_mode<synchronous>, transform_indices = @transform_3, window_bounds = array<i64: 128, 64>}, {pipeline_mode = #tpu.pipeline_mode<synchronous>, transform_indices = @transform_4, window_bounds = array<i64: 1, 64>}, {pipeline_mode = #tpu.pipeline_mode<synchronous>, transform_indices = @transform_5, window_bounds = array<i64: 64, 32>}, {pipeline_mode = #tpu.pipeline_mode<synchronous>, transform_indices = @transform_6, window_bounds = array<i64: 1, 32>}, {transform_indices = @transform_7, window_bounds = array<i64: 256, 32>}]} {
    %c0 = arith.constant 0 : index
    %c0_0 = arith.constant 0 : index
    %0 = vector.load %arg1[%c0, %c0_0] : memref<256x64xf32, #tpu.memory_space<vmem>>, vector<256x64xf32>
    %1 = arith.truncf %0 : vector<256x64xf32> to vector<256x64xbf16>
    %c0_1 = arith.constant 0 : index
    %c0_2 = arith.constant 0 : index
    %2 = vector.load %arg2[%c0_1, %c0_2] : memref<64x128xbf16, #tpu.memory_space<vmem>>, vector<64x128xbf16>
    %cst = arith.constant dense<0.000000e+00> : vector<256x128xf32>
    %3 = tpu.matmul %1, %2, %cst {dimension_numbers = #tpu.dot_dimension_numbers<[1], [0], [0], [1], [0, 0, 1, 1], [], []>} : vector<256x64xbf16>, vector<64x128xbf16>, vector<256x128xf32> -> vector<256x128xf32>
    %c0_3 = arith.constant 0 : index
    %c0_4 = arith.constant 0 : index
    %4 = vector.load %arg3[%c0_3, %c0_4] : memref<1x128xf32, #tpu.memory_space<vmem>>, vector<1x128xf32>
    %5 = vector.broadcast %4 : vector<1x128xf32> to vector<256x128xf32>
    %6 = arith.addf %3, %5 : vector<256x128xf32>
    %cst_5 = arith.constant 0.000000e+00 : f32
    %7 = vector.broadcast %cst_5 : f32 to vector<256x128xf32>
    %8 = arith.maximumf %6, %7 : vector<256x128xf32>
    %9 = arith.truncf %8 : vector<256x128xf32> to vector<256x128xbf16>
    %c0_6 = arith.constant 0 : index
    %c0_7 = arith.constant 0 : index
    %10 = vector.load %arg4[%c0_6, %c0_7] : memref<128x64xbf16, #tpu.memory_space<vmem>>, vector<128x64xbf16>
    %cst_8 = arith.constant dense<0.000000e+00> : vector<256x64xf32>
    %11 = tpu.matmul %9, %10, %cst_8 {dimension_numbers = #tpu.dot_dimension_numbers<[1], [0], [0], [1], [0, 0, 1, 1], [], []>} : vector<256x128xbf16>, vector<128x64xbf16>, vector<256x64xf32> -> vector<256x64xf32>
    %c0_9 = arith.constant 0 : index
    %c0_10 = arith.constant 0 : index
    %12 = vector.load %arg5[%c0_9, %c0_10] : memref<1x64xf32, #tpu.memory_space<vmem>>, vector<1x64xf32>
    %13 = vector.broadcast %12 : vector<1x64xf32> to vector<256x64xf32>
    %14 = arith.addf %11, %13 : vector<256x64xf32>
    %cst_11 = arith.constant 0.000000e+00 : f32
    %15 = vector.broadcast %cst_11 : f32 to vector<256x64xf32>
    %16 = arith.maximumf %14, %15 : vector<256x64xf32>
    %17 = arith.truncf %16 : vector<256x64xf32> to vector<256x64xbf16>
    %c0_12 = arith.constant 0 : index
    %c0_13 = arith.constant 0 : index
    %18 = vector.load %arg6[%c0_12, %c0_13] : memref<64x32xbf16, #tpu.memory_space<vmem>>, vector<64x32xbf16>
    %cst_14 = arith.constant dense<0.000000e+00> : vector<256x32xf32>
    %19 = tpu.matmul %17, %18, %cst_14 {dimension_numbers = #tpu.dot_dimension_numbers<[1], [0], [0], [1], [0, 0, 1, 1], [], []>} : vector<256x64xbf16>, vector<64x32xbf16>, vector<256x32xf32> -> vector<256x32xf32>
    %c0_15 = arith.constant 0 : index
    %c0_16 = arith.constant 0 : index
    %20 = vector.load %arg7[%c0_15, %c0_16] : memref<1x32xf32, #tpu.memory_space<vmem>>, vector<1x32xf32>
    %21 = vector.broadcast %20 : vector<1x32xf32> to vector<256x32xf32>
    %22 = arith.addf %19, %21 : vector<256x32xf32>
    %cst_17 = arith.constant 0.000000e+00 : f32
    %23 = vector.broadcast %cst_17 : f32 to vector<256x32xf32>
    %24 = arith.maximumf %22, %23 : vector<256x32xf32>
    %c0_18 = arith.constant 0 : index
    %c0_19 = arith.constant 0 : index
    %25 = vector.load %arg8[%c0_18, %c0_19] : memref<256x32xf32, #tpu.memory_space<vmem>>, vector<256x32xf32>
    tpu.vector_store %arg8[%c0_18, %c0_19], %24 {strides = array<i32>} : memref<256x32xf32, #tpu.memory_space<vmem>>, vector<256x32xf32>,
    return
  }
  func.func @transform_0(%arg0: i32) -> (i32, i32) {
    %c0_i32 = arith.constant 0 : i32
    %c0_i32_0 = arith.constant 0 : i32
    return %arg0, %c0_i32 : i32, i32
  }
  func.func @transform_1(%arg0: i32) -> (i32, i32) {
    %c0_i32 = arith.constant 0 : i32
    %c0_i32_0 = arith.constant 0 : i32
    %c0_i32_1 = arith.constant 0 : i32
    return %c0_i32, %c0_i32_0 : i32, i32
  }
  func.func @transform_2(%arg0: i32) -> (i32, i32) {
    %c0_i32 = arith.constant 0 : i32
    %c0_i32_0 = arith.constant 0 : i32
    %c0_i32_1 = arith.constant 0 : i32
    return %c0_i32, %c0_i32_0 : i32, i32
  }
  func.func @transform_3(%arg0: i32) -> (i32, i32) {
    %c0_i32 = arith.constant 0 : i32
    %c0_i32_0 = arith.constant 0 : i32
    %c0_i32_1 = arith.constant 0 : i32
    return %c0_i32, %c0_i32_0 : i32, i32
  }
  func.func @transform_4(%arg0: i32) -> (i32, i32) {
    %c0_i32 = arith.constant 0 : i32
    %c0_i32_0 = arith.constant 0 : i32
    %c0_i32_1 = arith.constant 0 : i32
    return %c0_i32, %c0_i32_0 : i32, i32
  }
  func.func @transform_5(%arg0: i32) -> (i32, i32) {
    %c0_i32 = arith.constant 0 : i32
    %c0_i32_0 = arith.constant 0 : i32
    %c0_i32_1 = arith.constant 0 : i32
    return %c0_i32, %c0_i32_0 : i32, i32
  }
  func.func @transform_6(%arg0: i32) -> (i32, i32) {
    %c0_i32 = arith.constant 0 : i32
    %c0_i32_0 = arith.constant 0 : i32
    %c0_i32_1 = arith.constant 0 : i32
    return %c0_i32, %c0_i32_0 : i32, i32
  }
  func.func @transform_7(%arg0: i32) -> (i32, i32) {
    %c0_i32 = arith.constant 0 : i32
    %c0_i32_0 = arith.constant 0 : i32
    return %arg0, %c0_i32 : i32, i32
  }
}

module attributes {stable_mosaic.version = 11 : i64} {
  func.func @_mlp_fused_kernel(%arg0: i32, %arg1: memref<256x64xf32, #tpu.memory_space<vmem>>, %arg2: memref<64x128xbf16, #tpu.memory_space<vmem>>, %arg3: memref<1x128xf32, #tpu.memory_space<vmem>>, %arg4: memref<128x64xbf16, #tpu.memory_space<vmem>>, %arg5: memref<1x64xf32, #tpu.memory_space<vmem>>, %arg6: memref<64x32xbf16, #tpu.memory_space<vmem>>, %arg7: memref<1x32xf32, #tpu.memory_space<vmem>>, %arg8: memref<256x32xf32, #tpu.memory_space<vmem>>) attributes {dimension_semantics = [#tpu.dimension_semantics<parallel>], iteration_bounds = array<i64: 2>, scalar_prefetch = 0 : i64, scratch_operands = 0 : i64, tpu.core_type = #tpu.core_type<tc>, window_params = [{transform_indices = @transform_0, window_bounds = array<i64: 256, 64>}, {pipeline_mode = #tpu.pipeline_mode<synchronous>, transform_indices = @transform_1, window_bounds = array<i64: 64, 128>}, {pipeline_mode = #tpu.pipeline_mode<synchronous>, transform_indices = @transform_2, window_bounds = array<i64: 1, 128>}, {pipeline_mode = #tpu.pipeline_mode<synchronous>, transform_indices = @transform_3, window_bounds = array<i64: 128, 64>}, {pipeline_mode = #tpu.pipeline_mode<synchronous>, transform_indices = @transform_4, window_bounds = array<i64: 1, 64>}, {pipeline_mode = #tpu.pipeline_mode<synchronous>, transform_indices = @transform_5, window_bounds = array<i64: 64, 32>}, {pipeline_mode = #tpu.pipeline_mode<synchronous>, transform_indices = @transform_6, window_bounds = array<i64: 1, 32>}, {transform_indices = @transform_7, window_bounds = array<i64: 256, 32>}]} {
    %c0 = arith.constant 0 : index
    %c0_0 = arith.constant 0 : index
    %0 = vector.load %arg1[%c0, %c0_0] : memref<256x64xf32, #tpu.memory_space<vmem>>, vector<256x64xf32>
    %1 = arith.truncf %0 : vector<256x64xf32> to vector<256x64xbf16>
    %c0_1 = arith.constant 0 : index
    %c0_2 = arith.constant 0 : index
    %2 = vector.load %arg2[%c0_1, %c0_2] : memref<64x128xbf16, #tpu.memory_space<vmem>>, vector<64x128xbf16>
    %cst = arith.constant dense<0.000000e+00> : vector<256x128xf32>
    %3 = tpu.matmul %1, %2, %cst {dimension_numbers = #tpu.dot_dimension_numbers<[1], [0], [0], [1], [0, 0, 1, 1], [], []>} : vector<256x64xbf16>, vector<64x128xbf16>, vector<256x128xf32> -> vector<256x128xf32>
    %c0_3 = arith.constant 0 : index
    %c0_4 = arith.constant 0 : index
    %4 = vector.load %arg3[%c0_3, %c0_4] : memref<1x128xf32, #tpu.memory_space<vmem>>, vector<1x128xf32>
    %5 = vector.broadcast %4 : vector<1x128xf32> to vector<256x128xf32>
    %6 = arith.addf %3, %5 : vector<256x128xf32>
    %cst_5 = arith.constant 0.000000e+00 : f32
    %7 = vector.broadcast %cst_5 : f32 to vector<256x128xf32>
    %8 = arith.maximumf %6, %7 : vector<256x128xf32>
    %9 = arith.truncf %8 : vector<256x128xf32> to vector<256x128xbf16>
    %c0_6 = arith.constant 0 : index
    %c0_7 = arith.constant 0 : index
    %10 = vector.load %arg4[%c0_6, %c0_7] : memref<128x64xbf16, #tpu.memory_space<vmem>>, vector<128x64xbf16>
    %cst_8 = arith.constant dense<0.000000e+00> : vector<256x64xf32>
    %11 = tpu.matmul %9, %10, %cst_8 {dimension_numbers = #tpu.dot_dimension_numbers<[1], [0], [0], [1], [0, 0, 1, 1], [], []>} : vector<256x128xbf16>, vector<128x64xbf16>, vector<256x64xf32> -> vector<256x64xf32>
    %c0_9 = arith.constant 0 : index
    %c0_10 = arith.constant 0 : index
    %12 = vector.load %arg5[%c0_9, %c0_10] : memref<1x64xf32, #tpu.memory_space<vmem>>, vector<1x64xf32>
    %13 = vector.broadcast %12 : vector<1x64xf32> to vector<256x64xf32>
    %14 = arith.addf %11, %13 : vector<256x64xf32>
    %cst_11 = arith.constant 0.000000e+00 : f32
    %15 = vector.broadcast %cst_11 : f32 to vector<256x64xf32>
    %16 = arith.maximumf %14, %15 : vector<256x64xf32>
    %17 = arith.truncf %16 : vector<256x64xf32> to vector<256x64xbf16>
    %c0_12 = arith.constant 0 : index
    %c0_13 = arith.constant 0 : index
    %18 = vector.load %arg6[%c0_12, %c0_13] : memref<64x32xbf16, #tpu.memory_space<vmem>>, vector<64x32xbf16>
    %cst_14 = arith.constant dense<0.000000e+00> : vector<256x32xf32>
    %19 = tpu.matmul %17, %18, %cst_14 {dimension_numbers = #tpu.dot_dimension_numbers<[1], [0], [0], [1], [0, 0, 1, 1], [], []>} : vector<256x64xbf16>, vector<64x32xbf16>, vector<256x32xf32> -> vector<256x32xf32>
    %c0_15 = arith.constant 0 : index
    %c0_16 = arith.constant 0 : index
    %20 = vector.load %arg7[%c0_15, %c0_16] : memref<1x32xf32, #tpu.memory_space<vmem>>, vector<1x32xf32>
    %21 = vector.broadcast %20 : vector<1x32xf32> to vector<256x32xf32>
    %22 = arith.addf %19, %21 : vector<256x32xf32>
    %cst_17 = arith.constant 0.000000e+00 : f32
    %23 = vector.broadcast %cst_17 : f32 to vector<256x32xf32>
    %24 = arith.maximumf %22, %23 : vector<256x32xf32>
    %c0_18 = arith.constant 0 : index
    %c0_19 = arith.constant 0 : index
    %25 = vector.load %arg8[%c0_18, %c0_19] : memref<256x32xf32, #tpu.memory_space<vmem>>, vector<256x32xf32>
    tpu.vector_store %arg8[%c0_18, %c0_19], %24 {strides = array<i32>} : memref<256x32xf32, #tpu.memory_space<vmem>>, vector<256x32xf32>,
    return
  }
  func.func @transform_0(%arg0: i32) -> (i32, i32) {
    %c0_i32 = arith.constant 0 : i32
    %c0_i32_0 = arith.constant 0 : i32
    return %arg0, %c0_i32 : i32, i32
  }
  func.func @transform_1(%arg0: i32) -> (i32, i32) {
    %c0_i32 = arith.constant 0 : i32
    %c0_i32_0 = arith.constant 0 : i32
    %c0_i32_1 = arith.constant 0 : i32
    return %c0_i32, %c0_i32_0 : i32, i32
  }
  func.func @transform_2(%arg0: i32) -> (i32, i32) {
    %c0_i32 = arith.constant 0 : i32
    %c0_i32_0 = arith.constant 0 : i32
    %c0_i32_1 = arith.constant 0 : i32
    return %c0_i32, %c0_i32_0 : i32, i32
  }
  func.func @transform_3(%arg0: i32) -> (i32, i32) {
    %c0_i32 = arith.constant 0 : i32
    %c0_i32_0 = arith.constant 0 : i32
    %c0_i32_1 = arith.constant 0 : i32
    return %c0_i32, %c0_i32_0 : i32, i32
  }
  func.func @transform_4(%arg0: i32) -> (i32, i32) {
    %c0_i32 = arith.constant 0 : i32
    %c0_i32_0 = arith.constant 0 : i32
    %c0_i32_1 = arith.constant 0 : i32
    return %c0_i32, %c0_i32_0 : i32, i32
  }
  func.func @transform_5(%arg0: i32) -> (i32, i32) {
    %c0_i32 = arith.constant 0 : i32
    %c0_i32_0 = arith.constant 0 : i32
    %c0_i32_1 = arith.constant 0 : i32
    return %c0_i32, %c0_i32_0 : i32, i32
  }
  func.func @transform_6(%arg0: i32) -> (i32, i32) {
    %c0_i32 = arith.constant 0 : i32
    %c0_i32_0 = arith.constant 0 : i32
    %c0_i32_1 = arith.constant 0 : i32
    return %c0_i32, %c0_i32_0 : i32, i32
  }
  func.func @transform_7(%arg0: i32) -> (i32, i32) {
    %c0_i32 = arith.constant 0 : i32
    %c0_i32_0 = arith.constant 0 : i32
    return %arg0, %c0_i32 : i32, i32
  }
}

</mosaic_0001>

<llo_original>
// kernel: tpu_custom_call.1
$region0: #{tpu_custom_call.1}
  #allocation0 [shape = 'u32[]', space=smem, size = 0x4, offset = 0x4, fixed_abs, tag = 'smem constant byte address 0x4 - core index']
  #allocation1 [shape = 'u32[144,128]{1,0:T(1,128)}', space=vmem, size = 0x12000, scoped, tag = 'internal scratch']
  %s0 = inlined_call_operand.vmem [shape: f32[512,64], index: 0, kind: input, shape index: {}]
  %s1 = inlined_call_operand.vmem [shape: bf16[64,128], index: 1, kind: input, shape index: {}]
  %s2 = inlined_call_operand.vmem [shape: f32[1,128], index: 2, kind: input, shape index: {}]
  %s3 = inlined_call_operand.vmem [shape: bf16[128,64], index: 3, kind: input, shape index: {}]
  %s4 = inlined_call_operand.vmem [shape: f32[1,64], index: 4, kind: input, shape index: {}]
  %s5 = inlined_call_operand.vmem [shape: bf16[64,32], index: 5, kind: input, shape index: {}]
  %s6 = inlined_call_operand.vmem [shape: f32[1,32], index: 6, kind: input, shape index: {}]
  %s7 = inlined_call_operand.vmem [shape: f32[512,32], index: 7, kind: output, shape index: {}]
  %s8 = sld [smem:[#allocation0]]
  $region61: #{tpu_custom_call.1} parent=0
    _
  %s10 = ssub.s32 1, %s8
  %s11 = scalar_select 0, %s10, %s8
  loop: start=0, step=1, limit=4
  $region2: #{tpu_custom_call.1} parent=0 // loop_pre_header
    _
  $region3: #{tpu_custom_call.1} parent=0 // loop_header
    %s13 = sphi 0, %s17
    %p14 = scmp.ge.s32.totalorder %s13, 4
    %s23 = sphi 0, %s25
    %s26 = sphi 0, %s23
    %s27 = sphi 0, %s26
    %s43 = sphi 0, %s27
    %s47 = sphi 0, %s47
    %s49 = sphi 0, %s47
    %s50 = sphi 0, %s49
    %s64 = sphi 0, %s50
    %s68 = sphi 0, %s68
    %s70 = sphi 0, %s68
    %s71 = sphi 0, %s70
    %s85 = sphi 0, %s71
    %s89 = sphi 0, %s89
    %s91 = sphi 0, %s89
    %s92 = sphi 0, %s91
    %s106 = sphi 0, %s92
    %s110 = sphi 0, %s110
    %s112 = sphi 0, %s110
    %s113 = sphi 0, %s112
    %s127 = sphi 0, %s113
    %s131 = sphi 0, %s131
    %s133 = sphi 0, %s131
    %s134 = sphi 0, %s133
    %s148 = sphi 0, %s134
    %s152 = sphi 0, %s152
    %s154 = sphi 0, %s152
    %s155 = sphi 0, %s154
    %s169 = sphi 0, %s155
    %s175 = sphi 0, %s177
    %s178 = sphi 0, %s175
    %s179 = sphi 0, %s178
    %s195 = sphi 0, %s179
  $region4: #{tpu_custom_call.1} parent=0 // loop_header_branch
    %16 = sbr.rel (%p14) target = $region8
  $region5: #{tpu_custom_call.1} parent=0 // loop_body
    %s18 = ssub.s32 %s13, 1
    %s19 = ssub.s32 %s13, 2
    %s20 = sadd.s32 %s13, 1
    %s21 = ssub.s32 %s13, %s20
    %p22 = scmp.eq.s32.totalorder %s21, 0
    %s24 = sadd.s32 %s23, 1
    %s25 = scalar_select %p22, %s23, %s24
    %p28 = pneg %p22
    %p29 = scmp.eq.s32.totalorder %s13, 1
    %p30 = por %p28, %p29
    %p31 = scmp.ne.s32.totalorder %s23, %s26
    %p32 = scmp.eq.s32.totalorder %s13, 0
    %p33 = por %p31, %p32
    %p34 = scmp.ne.s32.totalorder %s23, %s26
    %p35 = scmp.eq.s32.totalorder %s18, 1
    %p36 = por %p34, %p35
    %p37 = scmp.ne.s32.totalorder %s26, %s27
    %p38 = scmp.eq.s32.totalorder %s18, 0
    %p39 = por %p37, %p38
    %p40 = scmp.ne.s32.totalorder %s26, %s27
    %p41 = scmp.eq.s32.totalorder %s19, 1
    %p42 = por %p40, %p41
    %p44 = scmp.ne.s32.totalorder %s27, %s43
    %p45 = scmp.eq.s32.totalorder %s19, 0
    %p46 = por %p44, %p45
    %s48 = sadd.s32 %s47, 1
    %p51 = scmp.eq.s32.totalorder %s13, 1
    %p52 = scmp.ne.s32.totalorder %s47, %s49
    %p53 = scmp.eq.s32.totalorder %s13, 0
    %p54 = por %p52, %p53
    %p55 = scmp.ne.s32.totalorder %s47, %s49
    %p56 = scmp.eq.s32.totalorder %s18, 1
    %p57 = por %p55, %p56
    %p58 = scmp.ne.s32.totalorder %s49, %s50
    %p59 = scmp.eq.s32.totalorder %s18, 0
    %p60 = por %p58, %p59
    %p61 = scmp.ne.s32.totalorder %s49, %s50
    %p62 = scmp.eq.s32.totalorder %s19, 1
    %p63 = por %p61, %p62
    %p65 = scmp.ne.s32.totalorder %s50, %s64
    %p66 = scmp.eq.s32.totalorder %s19, 0
    %p67 = por %p65, %p66
    %s69 = sadd.s32 %s68, 1
    %p72 = scmp.eq.s32.totalorder %s13, 1
    %p73 = scmp.ne.s32.totalorder %s68, %s70
    %p74 = scmp.eq.s32.totalorder %s13, 0
    %p75 = por %p73, %p74
    %p76 = scmp.ne.s32.totalorder %s68, %s70
    %p77 = scmp.eq.s32.totalorder %s18, 1
    %p78 = por %p76, %p77
    %p79 = scmp.ne.s32.totalorder %s70, %s71
    %p80 = scmp.eq.s32.totalorder %s18, 0
    %p81 = por %p79, %p80
    %p82 = scmp.ne.s32.totalorder %s70, %s71
    %p83 = scmp.eq.s32.totalorder %s19, 1
    %p84 = por %p82, %p83
    %p86 = scmp.ne.s32.totalorder %s71, %s85
    %p87 = scmp.eq.s32.totalorder %s19, 0
    %p88 = por %p86, %p87
    %s90 = sadd.s32 %s89, 1
    %p93 = scmp.eq.s32.totalorder %s13, 1
    %p94 = scmp.ne.s32.totalorder %s89, %s91
    %p95 = scmp.eq.s32.totalorder %s13, 0
    %p96 = por %p94, %p95
    %p97 = scmp.ne.s32.totalorder %s89, %s91
    %p98 = scmp.eq.s32.totalorder %s18, 1
    %p99 = por %p97, %p98
    %p100 = scmp.ne.s32.totalorder %s91, %s92
    %p101 = scmp.eq.s32.totalorder %s18, 0
    %p102 = por %p100, %p101
    %p103 = scmp.ne.s32.totalorder %s91, %s92
    %p104 = scmp.eq.s32.totalorder %s19, 1
    %p105 = por %p103, %p104
    %p107 = scmp.ne.s32.totalorder %s92, %s106
    %p108 = scmp.eq.s32.totalorder %s19, 0
    %p109 = por %p107, %p108
    %s111 = sadd.s32 %s110, 1
    %p114 = scmp.eq.s32.totalorder %s13, 1
    %p115 = scmp.ne.s32.totalorder %s110, %s112
    %p116 = scmp.eq.s32.totalorder %s13, 0
    %p117 = por %p115, %p116
    %p118 = scmp.ne.s32.totalorder %s110, %s112
    %p119 = scmp.eq.s32.totalorder %s18, 1
    %p120 = por %p118, %p119
    %p121 = scmp.ne.s32.totalorder %s112, %s113
    %p122 = scmp.eq.s32.totalorder %s18, 0
    %p123 = por %p121, %p122
    %p124 = scmp.ne.s32.totalorder %s112, %s113
    %p125 = scmp.eq.s32.totalorder %s19, 1
    %p126 = por %p124, %p125
    %p128 = scmp.ne.s32.totalorder %s113, %s127
    %p129 = scmp.eq.s32.totalorder %s19, 0
    %p130 = por %p128, %p129
    %s132 = sadd.s32 %s131, 1
    %p135 = scmp.eq.s32.totalorder %s13, 1
    %p136 = scmp.ne.s32.totalorder %s131, %s133
    %p137 = scmp.eq.s32.totalorder %s13, 0
    %p138 = por %p136, %p137
    %p139 = scmp.ne.s32.totalorder %s131, %s133
    %p140 = scmp.eq.s32.totalorder %s18, 1
    %p141 = por %p139, %p140
    %p142 = scmp.ne.s32.totalorder %s133, %s134
    %p143 = scmp.eq.s32.totalorder %s18, 0
    %p144 = por %p142, %p143
    %p145 = scmp.ne.s32.totalorder %s133, %s134
    %p146 = scmp.eq.s32.totalorder %s19, 1
    %p147 = por %p145, %p146
    %p149 = scmp.ne.s32.totalorder %s134, %s148
    %p150 = scmp.eq.s32.totalorder %s19, 0
    %p151 = por %p149, %p150
    %s153 = sadd.s32 %s152, 1
    %p156 = scmp.eq.s32.totalorder %s13, 1
    %p157 = scmp.ne.s32.totalorder %s152, %s154
    %p158 = scmp.eq.s32.totalorder %s13, 0
    %p159 = por %p157, %p158
    %p160 = scmp.ne.s32.totalorder %s152, %s154
    %p161 = scmp.eq.s32.totalorder %s18, 1
    %p162 = por %p160, %p161
    %p163 = scmp.ne.s32.totalorder %s154, %s155
    %p164 = scmp.eq.s32.totalorder %s18, 0
    %p165 = por %p163, %p164
    %p166 = scmp.ne.s32.totalorder %s154, %s155
    %p167 = scmp.eq.s32.totalorder %s19, 1
    %p168 = por %p166, %p167
    %p170 = scmp.ne.s32.totalorder %s155, %s169
    %p171 = scmp.eq.s32.totalorder %s19, 0
    %p172 = por %p170, %p171
    %s173 = ssub.s32 %s13, %s20
    %p174 = scmp.eq.s32.totalorder %s173, 0
    %s176 = sadd.s32 %s175, 1
    %s177 = scalar_select %p174, %s175, %s176
    %p180 = pneg %p174
    %p181 = scmp.eq.s32.totalorder %s13, 1
    %p182 = por %p180, %p181
    %p183 = scmp.ne.s32.totalorder %s175, %s178
    %p184 = scmp.eq.s32.totalorder %s13, 0
    %p185 = por %p183, %p184
    %p186 = scmp.ne.s32.totalorder %s175, %s178
    %p187 = scmp.eq.s32.totalorder %s18, 1
    %p188 = por %p186, %p187
    %p189 = scmp.ne.s32.totalorder %s178, %s179
    %p190 = scmp.eq.s32.totalorder %s18, 0
    %p191 = por %p189, %p190
    %p192 = scmp.ne.s32.totalorder %s178, %s179
    %p193 = scmp.eq.s32.totalorder %s19, 1
    %p194 = por %p192, %p193
    %p196 = scmp.ne.s32.totalorder %s179, %s195
    %p197 = scmp.eq.s32.totalorder %s19, 0
    %p198 = por %p196, %p197
    %p199 = scmp.le.s32.totalorder 1, %s13
    %p200 = scmp.lt.s32.totalorder %s13, 3
    %p201 = pnand %p199, %p200
    %p202 = pneg %p201
    // Predicated region
    $region9: #{tpu_custom_call.1} parent=5 // pred_check
      _
    $region10: #{tpu_custom_call.1} parent=5 // pred_check_branch
      %204 = sbr.rel (%p201) target = $region12
    $region11: #{tpu_custom_call.1} parent=5 // pred_region
      %s205 = ssub.s32 %s13, 1
      // Predicated region
      $region13: #{tpu_custom_call.1} parent=11 // pred_check
        %p206 = pneg %p60
      $region14: #{tpu_custom_call.1} parent=11 // pred_check_branch
        %208 = sbr.rel (%p206) target = $region16
      $region15: #{tpu_custom_call.1} parent=11 // pred_region
        _
      $region16: #{tpu_custom_call.1} parent=11 // pred_fallthru
        _
      // Predicated region
      $region17: #{tpu_custom_call.1} parent=11 // pred_check
        %p209 = pneg %p81
      $region18: #{tpu_custom_call.1} parent=11 // pred_check_branch
        %211 = sbr.rel (%p209) target = $region20
      $region19: #{tpu_custom_call.1} parent=11 // pred_region
        _
      $region20: #{tpu_custom_call.1} parent=11 // pred_fallthru
        _
      // Predicated region
      $region21: #{tpu_custom_call.1} parent=11 // pred_check
        %p212 = pneg %p102
      $region22: #{tpu_custom_call.1} parent=11 // pred_check_branch
        %214 = sbr.rel (%p212) target = $region24
      $region23: #{tpu_custom_call.1} parent=11 // pred_region
        _
      $region24: #{tpu_custom_call.1} parent=11 // pred_fallthru
        _
      // Predicated region
      $region25: #{tpu_custom_call.1} parent=11 // pred_check
        %p215 = pneg %p123
      $region26: #{tpu_custom_call.1} parent=11 // pred_check_branch
        %217 = sbr.rel (%p215) target = $region28
      $region27: #{tpu_custom_call.1} parent=11 // pred_region
        _
      $region28: #{tpu_custom_call.1} parent=11 // pred_fallthru
        _
      // Predicated region
      $region29: #{tpu_custom_call.1} parent=11 // pred_check
        %p218 = pneg %p144
      $region30: #{tpu_custom_call.1} parent=11 // pred_check_branch
        %220 = sbr.rel (%p218) target = $region32
      $region31: #{tpu_custom_call.1} parent=11 // pred_region
        _
      $region32: #{tpu_custom_call.1} parent=11 // pred_fallthru
        _
      // Predicated region
      $region33: #{tpu_custom_call.1} parent=11 // pred_check
        %p221 = pneg %p165
      $region34: #{tpu_custom_call.1} parent=11 // pred_check_branch
        %223 = sbr.rel (%p221) target = $region36
      $region35: #{tpu_custom_call.1} parent=11 // pred_region
        _
      $region36: #{tpu_custom_call.1} parent=11 // pred_fallthru
        _
    $region12: #{tpu_custom_call.1} parent=5 // pred_fallthru
      _
    %p224 = scmp.lt.s32.totalorder %s13, 2
    // Predicated region
    $region37: #{tpu_custom_call.1} parent=5 // pred_check
      %p225 = pneg %p224
    $region38: #{tpu_custom_call.1} parent=5 // pred_check_branch
      %227 = sbr.rel (%p225) target = $region40
    $region39: #{tpu_custom_call.1} parent=5 // pred_region
      // Predicated region
      $region41: #{tpu_custom_call.1} parent=39 // pred_check
        %p228 = pneg %p33
      $region42: #{tpu_custom_call.1} parent=39 // pred_check_branch
        %230 = sbr.rel (%p228) target = $region44
      $region43: #{tpu_custom_call.1} parent=39 // pred_region
        %s231 = smul.u32 32, %s13
        %p232 = scmp.lt.s32.totalorder %s231, 63
        %s233 = scalar_select %p232, %s231, 63
        %s234 = smul.addr %s233, 8
        %s235 = scalar_lea.vmem %s0, %s234
        %s236 = smul.u32 32, %s13
      $region44: #{tpu_custom_call.1} parent=39 // pred_fallthru
        _
    $region40: #{tpu_custom_call.1} parent=5 // pred_fallthru
      _
    %p237 = scmp.le.s32.totalorder 1, %s13
    %p238 = scmp.lt.s32.totalorder %s13, 3
    %p239 = pnand %p237, %p238
    %p240 = pneg %p239
    // Predicated region
    $region45: #{tpu_custom_call.1} parent=5 // pred_check
      _
    $region46: #{tpu_custom_call.1} parent=5 // pred_check_branch
      %242 = sbr.rel (%p239) target = $region48
    $region47: #{tpu_custom_call.1} parent=5 // pred_region
      %s243 = ssub.s32 %s13, 1
      %s244 = smul.u32 32, %s18
      %p245 = scmp.lt.s32.totalorder %s244, 63
      %s246 = scalar_select %p245, %s244, 63
      %s247 = smul.addr %s246, 8
      %s248 = scalar_lea.vmem %s0, %s247
      %p249 = pneg %p39
      %p250 = pneg %p36
      %p251 = pneg %p60
      %p252 = pneg %p57
      %p253 = pneg %p81
      %p254 = pneg %p78
      %p255 = pneg %p102
      %p256 = pneg %p99
      %p257 = pneg %p123
      %p258 = pneg %p120
      %p259 = pneg %p144
      %p260 = pneg %p141
      %p261 = pneg %p165
      %p262 = pneg %p162
      %p263 = pneg %p191
      %p264 = pneg %p188
      %s265 = smul.u32 32, %s18
      %p266 = scmp.lt.s32.totalorder %s265, 63
      %s267 = scalar_select %p266, %s265, 63
      %s268 = smul.addr %s267, 8
      %s269 = scalar_lea.vmem %s7, %s268
      %s270 = smul.u32 32, %s18
      %p271 = scmp.lt.s32.totalorder %s270, 63
      %s272 = scalar_select %p271, %s270, 63
      %s273 = smul.addr %s272, 8
      %s274 = scalar_lea.vmem %s0, %s273
      %s275 = smul.u32 32, %s18
      %s276 = smul.u32 32, %s18
      %p277 = scmp.lt.s32.totalorder %s276, 63
      %s278 = scalar_select %p277, %s276, 63
      %s279 = smul.addr %s278, 8
      %s280 = scalar_lea.vmem %s7, %s279
      %s281 = smul.u32 32, %s18
      %v283 = vld [vmem:[%s274] sm:$0xff]
      %v284 = vld [vmem:[%s274 + $0x8] sm:$0xff]
      %v285 = vld [vmem:[%s274 + $0x10] sm:$0xff]
      %v286 = vld [vmem:[%s274 + $0x18] sm:$0xff]
      %v287 = vld [vmem:[%s274 + $0x20] sm:$0xff]
      %v288 = vld [vmem:[%s274 + $0x28] sm:$0xff]
      %v289 = vld [vmem:[%s274 + $0x30] sm:$0xff]
      %v290 = vld [vmem:[%s274 + $0x38] sm:$0xff]
      %v291 = vld [vmem:[%s274 + $0x40] sm:$0xff]
      %v292 = vld [vmem:[%s274 + $0x48] sm:$0xff]
      %v293 = vld [vmem:[%s274 + $0x50] sm:$0xff]
      %v294 = vld [vmem:[%s274 + $0x58] sm:$0xff]
      %v295 = vld [vmem:[%s274 + $0x60] sm:$0xff]
      %v296 = vld [vmem:[%s274 + $0x68] sm:$0xff]
      %v297 = vld [vmem:[%s274 + $0x70] sm:$0xff]
      %v298 = vld [vmem:[%s274 + $0x78] sm:$0xff]
      %v299 = vld [vmem:[%s274 + $0x80] sm:$0xff]
      %v300 = vld [vmem:[%s274 + $0x88] sm:$0xff]
      %v301 = vld [vmem:[%s274 + $0x90] sm:$0xff]
      %v302 = vld [vmem:[%s274 + $0x98] sm:$0xff]
      %v303 = vld [vmem:[%s274 + $0xa0] sm:$0xff]
      %v304 = vld [vmem:[%s274 + $0xa8] sm:$0xff]
      %v305 = vld [vmem:[%s274 + $0xb0] sm:$0xff]
      %v306 = vld [vmem:[%s274 + $0xb8] sm:$0xff]
      %v307 = vld [vmem:[%s274 + $0xc0] sm:$0xff]
      %v308 = vld [vmem:[%s274 + $0xc8] sm:$0xff]
      %v309 = vld [vmem:[%s274 + $0xd0] sm:$0xff]
      %v310 = vld [vmem:[%s274 + $0xd8] sm:$0xff]
      %v311 = vld [vmem:[%s274 + $0xe0] sm:$0xff]
      %v312 = vld [vmem:[%s274 + $0xe8] sm:$0xff]
      %v313 = vld [vmem:[%s274 + $0xf0] sm:$0xff]
      %v314 = vld [vmem:[%s274 + $0xf8] sm:$0xff]
      %v315 = vpack.c.bf16 %v284, %v283
      %v316 = vpack.c.bf16 %v286, %v285
      %v317 = vpack.c.bf16 %v288, %v287
      %v318 = vpack.c.bf16 %v290, %v289
      %v319 = vpack.c.bf16 %v292, %v291
      %v320 = vpack.c.bf16 %v294, %v293
      %v321 = vpack.c.bf16 %v296, %v295
      %v322 = vpack.c.bf16 %v298, %v297
      %v323 = vpack.c.bf16 %v300, %v299
      %v324 = vpack.c.bf16 %v302, %v301
      %v325 = vpack.c.bf16 %v304, %v303
      %v326 = vpack.c.bf16 %v306, %v305
      %v327 = vpack.c.bf16 %v308, %v307
      %v328 = vpack.c.bf16 %v310, %v309
      %v329 = vpack.c.bf16 %v312, %v311
      %v330 = vpack.c.bf16 %v314, %v313
      %v331 = vld [vmem:[%s1] sm:$0xf]
      %v332 = vld [vmem:[%s1 + $0x4] sm:$0xf]
      %v333 = vld [vmem:[%s1 + $0x8] sm:$0xf]
      %v334 = vld [vmem:[%s1 + $0xc] sm:$0xf]
      %v335 = vld [vmem:[%s1 + $0x10] sm:$0xf]
      %v336 = vld [vmem:[%s1 + $0x14] sm:$0xf]
      %v337 = vld [vmem:[%s1 + $0x18] sm:$0xf]
      %v338 = vld [vmem:[%s1 + $0x1c] sm:$0xf]
      %v339 = vld [vmem:[%s2] sm:$0x1]
      %v341 = vlaneseq
      %v342 = vshrl.u32 %v341, 7
      %v343 = vsub.s32 0, %v342
      %v344 = vrot.slane %v339, %v343
      %v354 = vunpack.c.l.b16 %v331
      %v355 = vunpack.c.l.b16 %v332
      %v356 = vunpack.c.l.b16 %v333
      %v357 = vunpack.c.l.b16 %v334
      %v358 = vunpack.c.l.b16 %v335
      %v359 = vunpack.c.l.b16 %v336
      %v360 = vunpack.c.l.b16 %v337
      %v361 = vunpack.c.l.b16 %v338
      %v362 = vpack.c.b16 %v355, %v354
      %v363 = vpack.c.b16 %v357, %v356
      %v364 = vpack.c.b16 %v359, %v358
      %v365 = vpack.c.b16 %v361, %v360
      %vm370 = vcmask 523264
      %v372 = vsel %vm370, %v315, 0
      %v375 = vsel %vm370, %v316, 0
      %v378 = vsel %vm370, %v317, 0
      %v381 = vsel %vm370, %v318, 0
      %v384 = vsel %vm370, %v319, 0
      %v387 = vsel %vm370, %v320, 0
      %v390 = vsel %vm370, %v321, 0
      %v393 = vsel %vm370, %v322, 0
      %v396 = vsel %vm370, %v323, 0
      %v399 = vsel %vm370, %v324, 0
      %v402 = vsel %vm370, %v325, 0
      %v405 = vsel %vm370, %v326, 0
      %v408 = vsel %vm370, %v327, 0
      %v411 = vsel %vm370, %v328, 0
      %v414 = vsel %vm370, %v329, 0
      %v417 = vsel %vm370, %v330, 0
      %419 = vmatprep.subr.bf16.mxu0 0
      %420 = vmatpush1.bf16.msra.mxu0 %v362
      %421 = vmatprep.subr.bf16.mxu0 0
      %422 = vmatpush1.bf16.msra.mxu0 %v363
      %423 = vmatprep.subr.bf16.mxu0 0
      %424 = vmatpush1.bf16.msra.mxu0 %v364
      %425 = vmatprep.subr.bf16.mxu0 0
      %426 = vmatpush1.bf16.msra.mxu0 %v365
      %427 = vmatprep.subr.bf16.mxu0 0
      %428 = vmatpush1.bf16.msra.mxu0 0
      %429 = vmatprep.subr.bf16.mxu0 0
      %430 = vmatpush1.bf16.msra.mxu0 0
      %431 = vmatprep.subr.bf16.mxu0 0
      %432 = vmatpush1.bf16.msra.mxu0 0
      %433 = vmatprep.subr.bf16.mxu0 0
      %434 = vmatpush1.bf16.msra.mxu0 0
      %435 = vmatprep.subr.bf16.mxu0 0
      %436 = vmatpush1.bf16.msra.mxu0 0
      %437 = vmatprep.subr.bf16.mxu0 0
      %438 = vmatpush1.bf16.msra.mxu0 0
      %439 = vmatprep.subr.bf16.mxu0 0
      %440 = vmatpush1.bf16.msra.mxu0 0
      %441 = vmatprep.subr.bf16.mxu0 0
      %442 = vmatpush1.bf16.msra.mxu0 0
      %443 = vmatprep.subr.bf16.mxu0 0
      %444 = vmatpush1.bf16.msra.mxu0 0
      %445 = vmatprep.subr.bf16.mxu0 0
      %446 = vmatpush1.bf16.msra.mxu0 0
      %447 = vmatprep.subr.bf16.mxu0 0
      %448 = vmatpush1.bf16.msra.mxu0 0
      %449 = vmatprep.subr.bf16.mxu0 0
      %450 = vmatpush1.bf16.msra.mxu0 0
      %451 = vmatprep.mubr.bf16.mxu0 0
      %452 = vmatmul.mubr.bf16.gmra.mrb[0].mxu0 %v372
      %v453 = vpop.f32.mrb[0].mxu0
      %v454 = vadd.f32 %v344, %v453
      %v455 = vpop.f32.mrb[0].mxu0
      %v456 = vpop.f32.mrb[0].mxu0
      %v457 = vadd.f32 %v344, %v456
      %v458 = vpop.f32.mrb[0].mxu0
      %459 = vmatprep.mubr.bf16.mxu0 0
      %460 = vmatmul.mubr.bf16.gmra.mrb[0].mxu0 %v375
      %v461 = vpop.f32.mrb[0].mxu0
      %v462 = vadd.f32 %v344, %v461
      %v463 = vpop.f32.mrb[0].mxu0
      %v464 = vpop.f32.mrb[0].mxu0
      %v465 = vadd.f32 %v344, %v464
      %v466 = vpop.f32.mrb[0].mxu0
      %467 = vmatprep.mubr.bf16.mxu0 0
      %468 = vmatmul.mubr.bf16.gmra.mrb[0].mxu0 %v378
      %v469 = vpop.f32.mrb[0].mxu0
      %v470 = vadd.f32 %v344, %v469
      %v471 = vpop.f32.mrb[0].mxu0
      %v472 = vpop.f32.mrb[0].mxu0
      %v473 = vadd.f32 %v344, %v472
      %v474 = vpop.f32.mrb[0].mxu0
      %475 = vmatprep.mubr.bf16.mxu0 0
      %476 = vmatmul.mubr.bf16.gmra.mrb[0].mxu0 %v381
      %v477 = vpop.f32.mrb[0].mxu0
      %v478 = vadd.f32 %v344, %v477
      %v479 = vpop.f32.mrb[0].mxu0
      %v480 = vpop.f32.mrb[0].mxu0
      %v481 = vadd.f32 %v344, %v480
      %v482 = vpop.f32.mrb[0].mxu0
      %483 = vmatprep.mubr.bf16.mxu0 0
      %484 = vmatmul.mubr.bf16.gmra.mrb[0].mxu0 %v384
      %v485 = vpop.f32.mrb[0].mxu0
      %v486 = vadd.f32 %v344, %v485
      %v487 = vpop.f32.mrb[0].mxu0
      %v488 = vpop.f32.mrb[0].mxu0
      %v489 = vadd.f32 %v344, %v488
      %v490 = vpop.f32.mrb[0].mxu0
      %491 = vmatprep.mubr.bf16.mxu0 0
      %492 = vmatmul.mubr.bf16.gmra.mrb[0].mxu0 %v387
      %v493 = vpop.f32.mrb[0].mxu0
      %v494 = vadd.f32 %v344, %v493
      %v495 = vpop.f32.mrb[0].mxu0
      %v496 = vpop.f32.mrb[0].mxu0
      %v497 = vadd.f32 %v344, %v496
      %v498 = vpop.f32.mrb[0].mxu0
      %499 = vmatprep.mubr.bf16.mxu0 0
      %500 = vmatmul.mubr.bf16.gmra.mrb[0].mxu0 %v390
      %v501 = vpop.f32.mrb[0].mxu0
      %v502 = vadd.f32 %v344, %v501
      %v503 = vpop.f32.mrb[0].mxu0
      %v504 = vpop.f32.mrb[0].mxu0
      %v505 = vadd.f32 %v344, %v504
      %v506 = vpop.f32.mrb[0].mxu0
      %507 = vmatprep.mubr.bf16.mxu0 0
      %508 = vmatmul.mubr.bf16.gmra.mrb[0].mxu0 %v393
      %v509 = vpop.f32.mrb[0].mxu0
      %v510 = vadd.f32 %v344, %v509
      %v511 = vpop.f32.mrb[0].mxu0
      %v512 = vpop.f32.mrb[0].mxu0
      %v513 = vadd.f32 %v344, %v512
      %v514 = vpop.f32.mrb[0].mxu0
      %515 = vmatprep.mubr.bf16.mxu0 0
      %516 = vmatmul.mubr.bf16.gmra.mrb[0].mxu0 %v396
      %v517 = vpop.f32.mrb[0].mxu0
      %v518 = vadd.f32 %v344, %v517
      %v519 = vpop.f32.mrb[0].mxu0
      %v520 = vpop.f32.mrb[0].mxu0
      %v521 = vadd.f32 %v344, %v520
      %v522 = vpop.f32.mrb[0].mxu0
      %523 = vmatprep.mubr.bf16.mxu0 0
      %524 = vmatmul.mubr.bf16.gmra.mrb[0].mxu0 %v399
      %v525 = vpop.f32.mrb[0].mxu0
      %v526 = vadd.f32 %v344, %v525
      %v527 = vpop.f32.mrb[0].mxu0
      %v528 = vpop.f32.mrb[0].mxu0
      %v529 = vadd.f32 %v344, %v528
      %v530 = vpop.f32.mrb[0].mxu0
      %531 = vmatprep.mubr.bf16.mxu0 0
      %532 = vmatmul.mubr.bf16.gmra.mrb[0].mxu0 %v402
      %v533 = vpop.f32.mrb[0].mxu0
      %v534 = vadd.f32 %v344, %v533
      %v535 = vpop.f32.mrb[0].mxu0
      %v536 = vpop.f32.mrb[0].mxu0
      %v537 = vadd.f32 %v344, %v536
      %v538 = vpop.f32.mrb[0].mxu0
      %539 = vmatprep.mubr.bf16.mxu0 0
      %540 = vmatmul.mubr.bf16.gmra.mrb[0].mxu0 %v405
      %v541 = vpop.f32.mrb[0].mxu0
      %v542 = vadd.f32 %v344, %v541
      %v543 = vpop.f32.mrb[0].mxu0
      %v544 = vpop.f32.mrb[0].mxu0
      %v545 = vadd.f32 %v344, %v544
      %v546 = vpop.f32.mrb[0].mxu0
      %547 = vmatprep.mubr.bf16.mxu0 0
      %548 = vmatmul.mubr.bf16.gmra.mrb[0].mxu0 %v408
      %v549 = vpop.f32.mrb[0].mxu0
      %v550 = vadd.f32 %v344, %v549
      %v551 = vpop.f32.mrb[0].mxu0
      %v552 = vpop.f32.mrb[0].mxu0
      %v553 = vadd.f32 %v344, %v552
      %v554 = vpop.f32.mrb[0].mxu0
      %555 = vmatprep.mubr.bf16.mxu0 0
      %556 = vmatmul.mubr.bf16.gmra.mrb[0].mxu0 %v411
      %v557 = vpop.f32.mrb[0].mxu0
      %v558 = vadd.f32 %v344, %v557
      %v559 = vpop.f32.mrb[0].mxu0
      %v560 = vpop.f32.mrb[0].mxu0
      %v561 = vadd.f32 %v344, %v560
      %v562 = vpop.f32.mrb[0].mxu0
      %563 = vmatprep.mubr.bf16.mxu0 0
      %564 = vmatmul.mubr.bf16.gmra.mrb[0].mxu0 %v414
      %v565 = vpop.f32.mrb[0].mxu0
      %v566 = vadd.f32 %v344, %v565
      %v567 = vpop.f32.mrb[0].mxu0
      %v568 = vpop.f32.mrb[0].mxu0
      %v569 = vadd.f32 %v344, %v568
      %v570 = vpop.f32.mrb[0].mxu0
      %571 = vmatprep.mubr.bf16.mxu0 0
      %572 = vmatmul.mubr.bf16.gmra.mrb[0].mxu0 %v417
      %v573 = vpop.f32.mrb[0].mxu0
      %v574 = vadd.f32 %v344, %v573
      %v575 = vpop.f32.mrb[0].mxu0
      %v576 = vpop.f32.mrb[0].mxu0
      %v577 = vadd.f32 %v344, %v576
      %v578 = vpop.f32.mrb[0].mxu0
      %579 = vdwg.mxu0
      %v580 = vmax.f32 %v454, 0.0
      %v581 = vmax.f32 %v457, 0.0
      %v582 = vmax.f32 %v462, 0.0
      %v583 = vmax.f32 %v465, 0.0
      %v584 = vmax.f32 %v470, 0.0
      %v585 = vmax.f32 %v473, 0.0
      %v586 = vmax.f32 %v478, 0.0
      %v587 = vmax.f32 %v481, 0.0
      %v588 = vmax.f32 %v486, 0.0
      %v589 = vmax.f32 %v489, 0.0
      %v590 = vmax.f32 %v494, 0.0
      %v591 = vmax.f32 %v497, 0.0
      %v592 = vmax.f32 %v502, 0.0
      %v593 = vmax.f32 %v505, 0.0
      %v594 = vmax.f32 %v510, 0.0
      %v595 = vmax.f32 %v513, 0.0
      %v596 = vmax.f32 %v518, 0.0
      %v597 = vmax.f32 %v521, 0.0
      %v598 = vmax.f32 %v526, 0.0
      %v599 = vmax.f32 %v529, 0.0
      %v600 = vmax.f32 %v534, 0.0
      %v601 = vmax.f32 %v537, 0.0
      %v602 = vmax.f32 %v542, 0.0
      %v603 = vmax.f32 %v545, 0.0
      %v604 = vmax.f32 %v550, 0.0
      %v605 = vmax.f32 %v553, 0.0
      %v606 = vmax.f32 %v558, 0.0
      %v607 = vmax.f32 %v561, 0.0
      %v608 = vmax.f32 %v566, 0.0
      %v609 = vmax.f32 %v569, 0.0
      %v610 = vmax.f32 %v574, 0.0
      %v611 = vmax.f32 %v577, 0.0
      %v612 = vpack.c.bf16 %v581, %v580
      %v613 = vpack.c.bf16 %v583, %v582
      %v614 = vpack.c.bf16 %v585, %v584
      %v615 = vpack.c.bf16 %v587, %v586
      %v616 = vpack.c.bf16 %v589, %v588
      %v617 = vpack.c.bf16 %v591, %v590
      %v618 = vpack.c.bf16 %v593, %v592
      %v619 = vpack.c.bf16 %v595, %v594
      %v620 = vpack.c.bf16 %v597, %v596
      %v621 = vpack.c.bf16 %v599, %v598
      %v622 = vpack.c.bf16 %v601, %v600
      %v623 = vpack.c.bf16 %v603, %v602
      %v624 = vpack.c.bf16 %v605, %v604
      %v625 = vpack.c.bf16 %v607, %v606
      %v626 = vpack.c.bf16 %v609, %v608
      %v627 = vpack.c.bf16 %v611, %v610
      %v628 = vld [vmem:[%s3] sm:$0xf]
      %v629 = vld [vmem:[%s3 + $0x4] sm:$0xf]
      %v630 = vld [vmem:[%s3 + $0x8] sm:$0xf]
      %v631 = vld [vmem:[%s3 + $0xc] sm:$0xf]
      %v632 = vld [vmem:[%s3 + $0x10] sm:$0xf]
      %v633 = vld [vmem:[%s3 + $0x14] sm:$0xf]
      %v634 = vld [vmem:[%s3 + $0x18] sm:$0xf]
      %v635 = vld [vmem:[%s3 + $0x1c] sm:$0xf]
      %v636 = vld [vmem:[%s3 + $0x20] sm:$0xf]
      %v637 = vld [vmem:[%s3 + $0x24] sm:$0xf]
      %v638 = vld [vmem:[%s3 + $0x28] sm:$0xf]
      %v639 = vld [vmem:[%s3 + $0x2c] sm:$0xf]
      %v640 = vld [vmem:[%s3 + $0x30] sm:$0xf]
      %v641 = vld [vmem:[%s3 + $0x34] sm:$0xf]
      %v642 = vld [vmem:[%s3 + $0x38] sm:$0xf]
      %v643 = vld [vmem:[%s3 + $0x3c] sm:$0xf]
      %v644 = vld [vmem:[%s4] sm:$0x1]
      %v646 = vlaneseq
      %v647 = vshrl.u32 %v646, 7
      %v648 = vsub.s32 0, %v647
      %v649 = vrot.slane %v644, %v648
      %v667 = vunpack.c.l.b16 %v628
      %v668 = vunpack.c.l.b16 %v629
      %v669 = vunpack.c.l.b16 %v630
      %v670 = vunpack.c.l.b16 %v631
      %v671 = vunpack.c.l.b16 %v632
      %v672 = vunpack.c.l.b16 %v633
      %v673 = vunpack.c.l.b16 %v634
      %v674 = vunpack.c.l.b16 %v635
      %v675 = vunpack.c.l.b16 %v636
      %v676 = vunpack.c.l.b16 %v637
      %v677 = vunpack.c.l.b16 %v638
      %v678 = vunpack.c.l.b16 %v639
      %v679 = vunpack.c.l.b16 %v640
      %v680 = vunpack.c.l.b16 %v641
      %v681 = vunpack.c.l.b16 %v642
      %v682 = vunpack.c.l.b16 %v643
      %v683 = vpack.c.b16 %v668, %v667
      %v684 = vpack.c.b16 %v670, %v669
      %v685 = vpack.c.b16 %v672, %v671
      %v686 = vpack.c.b16 %v674, %v673
      %v687 = vpack.c.b16 %v676, %v675
      %v688 = vpack.c.b16 %v678, %v677
      %v689 = vpack.c.b16 %v680, %v679
      %v690 = vpack.c.b16 %v682, %v681
      %699 = vmatprep.subr.bf16.mxu0 0
      %700 = vmatpush1.bf16.msra.mxu0 %v683
      %701 = vmatprep.subr.bf16.mxu0 0
      %702 = vmatpush1.bf16.msra.mxu0 %v684
      %703 = vmatprep.subr.bf16.mxu0 0
      %704 = vmatpush1.bf16.msra.mxu0 %v685
      %705 = vmatprep.subr.bf16.mxu0 0
      %706 = vmatpush1.bf16.msra.mxu0 %v686
      %707 = vmatprep.subr.bf16.mxu0 0
      %708 = vmatpush1.bf16.msra.mxu0 %v687
      %709 = vmatprep.subr.bf16.mxu0 0
      %710 = vmatpush1.bf16.msra.mxu0 %v688
      %711 = vmatprep.subr.bf16.mxu0 0
      %712 = vmatpush1.bf16.msra.mxu0 %v689
      %713 = vmatprep.subr.bf16.mxu0 0
      %714 = vmatpush1.bf16.msra.mxu0 %v690
      %715 = vmatprep.subr.bf16.mxu0 0
      %716 = vmatpush1.bf16.msra.mxu0 0
      %717 = vmatprep.subr.bf16.mxu0 0
      %718 = vmatpush1.bf16.msra.mxu0 0
      %719 = vmatprep.subr.bf16.mxu0 0
      %720 = vmatpush1.bf16.msra.mxu0 0
      %721 = vmatprep.subr.bf16.mxu0 0
      %722 = vmatpush1.bf16.msra.mxu0 0
      %723 = vmatprep.subr.bf16.mxu0 0
      %724 = vmatpush1.bf16.msra.mxu0 0
      %725 = vmatprep.subr.bf16.mxu0 0
      %726 = vmatpush1.bf16.msra.mxu0 0
      %727 = vmatprep.subr.bf16.mxu0 0
      %728 = vmatpush1.bf16.msra.mxu0 0
      %729 = vmatprep.subr.bf16.mxu0 0
      %730 = vmatpush1.bf16.msra.mxu0 0
      %731 = vmatprep.mubr.bf16.mxu0 0
      %732 = vmatmul.mubr.bf16.gmra.mrb[0].mxu0 %v612
      %v733 = vpop.f32.mrb[0].mxu0
      %v734 = vadd.f32 %v649, %v733
      %v735 = vpop.f32.mrb[0].mxu0
      %v736 = vpop.f32.mrb[0].mxu0
      %v737 = vadd.f32 %v649, %v736
      %v738 = vpop.f32.mrb[0].mxu0
      %739 = vmatprep.mubr.bf16.mxu0 0
      %740 = vmatmul.mubr.bf16.gmra.mrb[0].mxu0 %v613
      %v741 = vpop.f32.mrb[0].mxu0
      %v742 = vadd.f32 %v649, %v741
      %v743 = vpop.f32.mrb[0].mxu0
      %v744 = vpop.f32.mrb[0].mxu0
      %v745 = vadd.f32 %v649, %v744
      %v746 = vpop.f32.mrb[0].mxu0
      %747 = vmatprep.mubr.bf16.mxu0 0
      %748 = vmatmul.mubr.bf16.gmra.mrb[0].mxu0 %v614
      %v749 = vpop.f32.mrb[0].mxu0
      %v750 = vadd.f32 %v649, %v749
      %v751 = vpop.f32.mrb[0].mxu0
      %v752 = vpop.f32.mrb[0].mxu0
      %v753 = vadd.f32 %v649, %v752
      %v754 = vpop.f32.mrb[0].mxu0
      %755 = vmatprep.mubr.bf16.mxu0 0
      %756 = vmatmul.mubr.bf16.gmra.mrb[0].mxu0 %v615
      %v757 = vpop.f32.mrb[0].mxu0
      %v758 = vadd.f32 %v649, %v757
      %v759 = vpop.f32.mrb[0].mxu0
      %v760 = vpop.f32.mrb[0].mxu0
      %v761 = vadd.f32 %v649, %v760
      %v762 = vpop.f32.mrb[0].mxu0
      %763 = vmatprep.mubr.bf16.mxu0 0
      %764 = vmatmul.mubr.bf16.gmra.mrb[0].mxu0 %v616
      %v765 = vpop.f32.mrb[0].mxu0
      %v766 = vadd.f32 %v649, %v765
      %v767 = vpop.f32.mrb[0].mxu0
      %v768 = vpop.f32.mrb[0].mxu0
      %v769 = vadd.f32 %v649, %v768
      %v770 = vpop.f32.mrb[0].mxu0
      %771 = vmatprep.mubr.bf16.mxu0 0
      %772 = vmatmul.mubr.bf16.gmra.mrb[0].mxu0 %v617
      %v773 = vpop.f32.mrb[0].mxu0
      %v774 = vadd.f32 %v649, %v773
      %v775 = vpop.f32.mrb[0].mxu0
      %v776 = vpop.f32.mrb[0].mxu0
      %v777 = vadd.f32 %v649, %v776
      %v778 = vpop.f32.mrb[0].mxu0
      %779 = vmatprep.mubr.bf16.mxu0 0
      %780 = vmatmul.mubr.bf16.gmra.mrb[0].mxu0 %v618
      %v781 = vpop.f32.mrb[0].mxu0
      %v782 = vadd.f32 %v649, %v781
      %v783 = vpop.f32.mrb[0].mxu0
      %v784 = vpop.f32.mrb[0].mxu0
      %v785 = vadd.f32 %v649, %v784
      %v786 = vpop.f32.mrb[0].mxu0
      %787 = vmatprep.mubr.bf16.mxu0 0
      %788 = vmatmul.mubr.bf16.gmra.mrb[0].mxu0 %v619
      %v789 = vpop.f32.mrb[0].mxu0
      %v790 = vadd.f32 %v649, %v789
      %v791 = vpop.f32.mrb[0].mxu0
      %v792 = vpop.f32.mrb[0].mxu0
      %v793 = vadd.f32 %v649, %v792
      %v794 = vpop.f32.mrb[0].mxu0
      %795 = vmatprep.mubr.bf16.mxu0 0
      %796 = vmatmul.mubr.bf16.gmra.mrb[0].mxu0 %v620
      %v797 = vpop.f32.mrb[0].mxu0
      %v798 = vadd.f32 %v649, %v797
      %v799 = vpop.f32.mrb[0].mxu0
      %v800 = vpop.f32.mrb[0].mxu0
      %v801 = vadd.f32 %v649, %v800
      %v802 = vpop.f32.mrb[0].mxu0
      %803 = vmatprep.mubr.bf16.mxu0 0
      %804 = vmatmul.mubr.bf16.gmra.mrb[0].mxu0 %v621
      %v805 = vpop.f32.mrb[0].mxu0
      %v806 = vadd.f32 %v649, %v805
      %v807 = vpop.f32.mrb[0].mxu0
      %v808 = vpop.f32.mrb[0].mxu0
      %v809 = vadd.f32 %v649, %v808
      %v810 = vpop.f32.mrb[0].mxu0
      %811 = vmatprep.mubr.bf16.mxu0 0
      %812 = vmatmul.mubr.bf16.gmra.mrb[0].mxu0 %v622
      %v813 = vpop.f32.mrb[0].mxu0
      %v814 = vadd.f32 %v649, %v813
      %v815 = vpop.f32.mrb[0].mxu0
      %v816 = vpop.f32.mrb[0].mxu0
      %v817 = vadd.f32 %v649, %v816
      %v818 = vpop.f32.mrb[0].mxu0
      %819 = vmatprep.mubr.bf16.mxu0 0
      %820 = vmatmul.mubr.bf16.gmra.mrb[0].mxu0 %v623
      %v821 = vpop.f32.mrb[0].mxu0
      %v822 = vadd.f32 %v649, %v821
      %v823 = vpop.f32.mrb[0].mxu0
      %v824 = vpop.f32.mrb[0].mxu0
      %v825 = vadd.f32 %v649, %v824
      %v826 = vpop.f32.mrb[0].mxu0
      %827 = vmatprep.mubr.bf16.mxu0 0
      %828 = vmatmul.mubr.bf16.gmra.mrb[0].mxu0 %v624
      %v829 = vpop.f32.mrb[0].mxu0
      %v830 = vadd.f32 %v649, %v829
      %v831 = vpop.f32.mrb[0].mxu0
      %v832 = vpop.f32.mrb[0].mxu0
      %v833 = vadd.f32 %v649, %v832
      %v834 = vpop.f32.mrb[0].mxu0
      %835 = vmatprep.mubr.bf16.mxu0 0
      %836 = vmatmul.mubr.bf16.gmra.mrb[0].mxu0 %v625
      %v837 = vpop.f32.mrb[0].mxu0
      %v838 = vadd.f32 %v649, %v837
      %v839 = vpop.f32.mrb[0].mxu0
      %v840 = vpop.f32.mrb[0].mxu0
      %v841 = vadd.f32 %v649, %v840
      %v842 = vpop.f32.mrb[0].mxu0
      %843 = vmatprep.mubr.bf16.mxu0 0
      %844 = vmatmul.mubr.bf16.gmra.mrb[0].mxu0 %v626
      %v845 = vpop.f32.mrb[0].mxu0
      %v846 = vadd.f32 %v649, %v845
      %v847 = vpop.f32.mrb[0].mxu0
      %v848 = vpop.f32.mrb[0].mxu0
      %v849 = vadd.f32 %v649, %v848
      %v850 = vpop.f32.mrb[0].mxu0
      %851 = vmatprep.mubr.bf16.mxu0 0
      %852 = vmatmul.mubr.bf16.gmra.mrb[0].mxu0 %v627
      %v853 = vpop.f32.mrb[0].mxu0
      %v854 = vadd.f32 %v649, %v853
      %v855 = vpop.f32.mrb[0].mxu0
      %v856 = vpop.f32.mrb[0].mxu0
      %v857 = vadd.f32 %v649, %v856
      %v858 = vpop.f32.mrb[0].mxu0
      %859 = vdwg.mxu0
      %v860 = vmax.f32 %v734, 0.0
      %v861 = vmax.f32 %v737, 0.0
      %v862 = vmax.f32 %v742, 0.0
      %v863 = vmax.f32 %v745, 0.0
      %v864 = vmax.f32 %v750, 0.0
      %v865 = vmax.f32 %v753, 0.0
      %v866 = vmax.f32 %v758, 0.0
      %v867 = vmax.f32 %v761, 0.0
      %v868 = vmax.f32 %v766, 0.0
      %v869 = vmax.f32 %v769, 0.0
      %v870 = vmax.f32 %v774, 0.0
      %v871 = vmax.f32 %v777, 0.0
      %v872 = vmax.f32 %v782, 0.0
      %v873 = vmax.f32 %v785, 0.0
      %v874 = vmax.f32 %v790, 0.0
      %v875 = vmax.f32 %v793, 0.0
      %v876 = vmax.f32 %v798, 0.0
      %v877 = vmax.f32 %v801, 0.0
      %v878 = vmax.f32 %v806, 0.0
      %v879 = vmax.f32 %v809, 0.0
      %v880 = vmax.f32 %v814, 0.0
      %v881 = vmax.f32 %v817, 0.0
      %v882 = vmax.f32 %v822, 0.0
      %v883 = vmax.f32 %v825, 0.0
      %v884 = vmax.f32 %v830, 0.0
      %v885 = vmax.f32 %v833, 0.0
      %v886 = vmax.f32 %v838, 0.0
      %v887 = vmax.f32 %v841, 0.0
      %v888 = vmax.f32 %v846, 0.0
      %v889 = vmax.f32 %v849, 0.0
      %v890 = vmax.f32 %v854, 0.0
      %v891 = vmax.f32 %v857, 0.0
      %v892 = vpack.c.bf16 %v861, %v860
      %v893 = vpack.c.bf16 %v863, %v862
      %v894 = vpack.c.bf16 %v865, %v864
      %v895 = vpack.c.bf16 %v867, %v866
      %v896 = vpack.c.bf16 %v869, %v868
      %v897 = vpack.c.bf16 %v871, %v870
      %v898 = vpack.c.bf16 %v873, %v872
      %v899 = vpack.c.bf16 %v875, %v874
      %v900 = vpack.c.bf16 %v877, %v876
      %v901 = vpack.c.bf16 %v879, %v878
      %v902 = vpack.c.bf16 %v881, %v880
      %v903 = vpack.c.bf16 %v883, %v882
      %v904 = vpack.c.bf16 %v885, %v884
      %v905 = vpack.c.bf16 %v887, %v886
      %v906 = vpack.c.bf16 %v889, %v888
      %v907 = vpack.c.bf16 %v891, %v890
      %v908 = vld [vmem:[%s5] sm:$0xf]
      %v909 = vld [vmem:[%s5 + $0x4] sm:$0xf]
      %v910 = vld [vmem:[%s5 + $0x8] sm:$0xf]
      %v911 = vld [vmem:[%s5 + $0xc] sm:$0xf]
      %v912 = vld [vmem:[%s5 + $0x10] sm:$0xf]
      %v913 = vld [vmem:[%s5 + $0x14] sm:$0xf]
      %v914 = vld [vmem:[%s5 + $0x18] sm:$0xf]
      %v915 = vld [vmem:[%s5 + $0x1c] sm:$0xf]
      %v916 = vld [vmem:[%s6] sm:$0x1]
      %v918 = vlaneseq
      %v919 = vshrl.u32 %v918, 7
      %v920 = vsub.s32 0, %v919
      %v921 = vrot.slane %v916, %v920
      %v931 = vunpack.c.l.b16 %v908
      %v932 = vunpack.c.l.b16 %v909
      %v933 = vunpack.c.l.b16 %v910
      %v934 = vunpack.c.l.b16 %v911
      %v935 = vunpack.c.l.b16 %v912
      %v936 = vunpack.c.l.b16 %v913
      %v937 = vunpack.c.l.b16 %v914
      %v938 = vunpack.c.l.b16 %v915
      %v939 = vpack.c.b16 %v932, %v931
      %v940 = vpack.c.b16 %v934, %v933
      %v941 = vpack.c.b16 %v936, %v935
      %v942 = vpack.c.b16 %v938, %v937
      %v948 = vsel %vm370, %v892, 0
      %v951 = vsel %vm370, %v893, 0
      %v954 = vsel %vm370, %v894, 0
      %v957 = vsel %vm370, %v895, 0
      %v960 = vsel %vm370, %v896, 0
      %v963 = vsel %vm370, %v897, 0
      %v966 = vsel %vm370, %v898, 0
      %v969 = vsel %vm370, %v899, 0
      %v972 = vsel %vm370, %v900, 0
      %v975 = vsel %vm370, %v901, 0
      %v978 = vsel %vm370, %v902, 0
      %v981 = vsel %vm370, %v903, 0
      %v984 = vsel %vm370, %v904, 0
      %v987 = vsel %vm370, %v905, 0
      %v990 = vsel %vm370, %v906, 0
      %v993 = vsel %vm370, %v907, 0
      %995 = vmatprep.subr.bf16.mxu0 0
      %996 = vmatpush1.bf16.msra.mxu0 %v939
      %997 = vmatprep.subr.bf16.mxu0 0
      %998 = vmatpush1.bf16.msra.mxu0 %v940
      %999 = vmatprep.subr.bf16.mxu0 0
      %1000 = vmatpush1.bf16.msra.mxu0 %v941
      %1001 = vmatprep.subr.bf16.mxu0 0
      %1002 = vmatpush1.bf16.msra.mxu0 %v942
      %1003 = vmatprep.subr.bf16.mxu0 0
      %1004 = vmatpush1.bf16.msra.mxu0 0
      %1005 = vmatprep.subr.bf16.mxu0 0
      %1006 = vmatpush1.bf16.msra.mxu0 0
      %1007 = vmatprep.subr.bf16.mxu0 0
      %1008 = vmatpush1.bf16.msra.mxu0 0
      %1009 = vmatprep.subr.bf16.mxu0 0
      %1010 = vmatpush1.bf16.msra.mxu0 0
      %1011 = vmatprep.subr.bf16.mxu0 0
      %1012 = vmatpush1.bf16.msra.mxu0 0
      %1013 = vmatprep.subr.bf16.mxu0 0
      %1014 = vmatpush1.bf16.msra.mxu0 0
      %1015 = vmatprep.subr.bf16.mxu0 0
      %1016 = vmatpush1.bf16.msra.mxu0 0
      %1017 = vmatprep.subr.bf16.mxu0 0
      %1018 = vmatpush1.bf16.msra.mxu0 0
      %1019 = vmatprep.subr.bf16.mxu0 0
      %1020 = vmatpush1.bf16.msra.mxu0 0
      %1021 = vmatprep.subr.bf16.mxu0 0
      %1022 = vmatpush1.bf16.msra.mxu0 0
      %1023 = vmatprep.subr.bf16.mxu0 0
      %1024 = vmatpush1.bf16.msra.mxu0 0
      %1025 = vmatprep.subr.bf16.mxu0 0
      %1026 = vmatpush1.bf16.msra.mxu0 0
      %1027 = vmatprep.mubr.bf16.mxu0 0
      %1028 = vmatmul.mubr.bf16.gmra.mrb[0].mxu0 %v948
      %v1029 = vpop.f32.mrb[0].mxu0
      %v1030 = vadd.f32 %v921, %v1029
      %v1031 = vpop.f32.mrb[0].mxu0
      %v1032 = vpop.f32.mrb[0].mxu0
      %v1033 = vadd.f32 %v921, %v1032
      %v1034 = vpop.f32.mrb[0].mxu0
      %1035 = vmatprep.mubr.bf16.mxu0 0
      %1036 = vmatmul.mubr.bf16.gmra.mrb[0].mxu0 %v951
      %v1037 = vpop.f32.mrb[0].mxu0
      %v1038 = vadd.f32 %v921, %v1037
      %v1039 = vpop.f32.mrb[0].mxu0
      %v1040 = vpop.f32.mrb[0].mxu0
      %v1041 = vadd.f32 %v921, %v1040
      %v1042 = vpop.f32.mrb[0].mxu0
      %1043 = vmatprep.mubr.bf16.mxu0 0
      %1044 = vmatmul.mubr.bf16.gmra.mrb[0].mxu0 %v954
      %v1045 = vpop.f32.mrb[0].mxu0
      %v1046 = vadd.f32 %v921, %v1045
      %v1047 = vpop.f32.mrb[0].mxu0
      %v1048 = vpop.f32.mrb[0].mxu0
      %v1049 = vadd.f32 %v921, %v1048
      %v1050 = vpop.f32.mrb[0].mxu0
      %1051 = vmatprep.mubr.bf16.mxu0 0
      %1052 = vmatmul.mubr.bf16.gmra.mrb[0].mxu0 %v957
      %v1053 = vpop.f32.mrb[0].mxu0
      %v1054 = vadd.f32 %v921, %v1053
      %v1055 = vpop.f32.mrb[0].mxu0
      %v1056 = vpop.f32.mrb[0].mxu0
      %v1057 = vadd.f32 %v921, %v1056
      %v1058 = vpop.f32.mrb[0].mxu0
      %1059 = vmatprep.mubr.bf16.mxu0 0
      %1060 = vmatmul.mubr.bf16.gmra.mrb[0].mxu0 %v960
      %v1061 = vpop.f32.mrb[0].mxu0
      %v1062 = vadd.f32 %v921, %v1061
      %v1063 = vpop.f32.mrb[0].mxu0
      %v1064 = vpop.f32.mrb[0].mxu0
      %v1065 = vadd.f32 %v921, %v1064
      %v1066 = vpop.f32.mrb[0].mxu0
      %1067 = vmatprep.mubr.bf16.mxu0 0
      %1068 = vmatmul.mubr.bf16.gmra.mrb[0].mxu0 %v963
      %v1069 = vpop.f32.mrb[0].mxu0
      %v1070 = vadd.f32 %v921, %v1069
      %v1071 = vpop.f32.mrb[0].mxu0
      %v1072 = vpop.f32.mrb[0].mxu0
      %v1073 = vadd.f32 %v921, %v1072
      %v1074 = vpop.f32.mrb[0].mxu0
      %1075 = vmatprep.mubr.bf16.mxu0 0
      %1076 = vmatmul.mubr.bf16.gmra.mrb[0].mxu0 %v966
      %v1077 = vpop.f32.mrb[0].mxu0
      %v1078 = vadd.f32 %v921, %v1077
      %v1079 = vpop.f32.mrb[0].mxu0
      %v1080 = vpop.f32.mrb[0].mxu0
      %v1081 = vadd.f32 %v921, %v1080
      %v1082 = vpop.f32.mrb[0].mxu0
      %1083 = vmatprep.mubr.bf16.mxu0 0
      %1084 = vmatmul.mubr.bf16.gmra.mrb[0].mxu0 %v969
      %v1085 = vpop.f32.mrb[0].mxu0
      %v1086 = vadd.f32 %v921, %v1085
      %v1087 = vpop.f32.mrb[0].mxu0
      %v1088 = vpop.f32.mrb[0].mxu0
      %v1089 = vadd.f32 %v921, %v1088
      %v1090 = vpop.f32.mrb[0].mxu0
      %1091 = vmatprep.mubr.bf16.mxu0 0
      %1092 = vmatmul.mubr.bf16.gmra.mrb[0].mxu0 %v972
      %v1093 = vpop.f32.mrb[0].mxu0
      %v1094 = vadd.f32 %v921, %v1093
      %v1095 = vpop.f32.mrb[0].mxu0
      %v1096 = vpop.f32.mrb[0].mxu0
      %v1097 = vadd.f32 %v921, %v1096
      %v1098 = vpop.f32.mrb[0].mxu0
      %1099 = vmatprep.mubr.bf16.mxu0 0
      %1100 = vmatmul.mubr.bf16.gmra.mrb[0].mxu0 %v975
      %v1101 = vpop.f32.mrb[0].mxu0
      %v1102 = vadd.f32 %v921, %v1101
      %v1103 = vpop.f32.mrb[0].mxu0
      %v1104 = vpop.f32.mrb[0].mxu0
      %v1105 = vadd.f32 %v921, %v1104
      %v1106 = vpop.f32.mrb[0].mxu0
      %1107 = vmatprep.mubr.bf16.mxu0 0
      %1108 = vmatmul.mubr.bf16.gmra.mrb[0].mxu0 %v978
      %v1109 = vpop.f32.mrb[0].mxu0
      %v1110 = vadd.f32 %v921, %v1109
      %v1111 = vpop.f32.mrb[0].mxu0
      %v1112 = vpop.f32.mrb[0].mxu0
      %v1113 = vadd.f32 %v921, %v1112
      %v1114 = vpop.f32.mrb[0].mxu0
      %1115 = vmatprep.mubr.bf16.mxu0 0
      %1116 = vmatmul.mubr.bf16.gmra.mrb[0].mxu0 %v981
      %v1117 = vpop.f32.mrb[0].mxu0
      %v1118 = vadd.f32 %v921, %v1117
      %v1119 = vpop.f32.mrb[0].mxu0
      %v1120 = vpop.f32.mrb[0].mxu0
      %v1121 = vadd.f32 %v921, %v1120
      %v1122 = vpop.f32.mrb[0].mxu0
      %1123 = vmatprep.mubr.bf16.mxu0 0
      %1124 = vmatmul.mubr.bf16.gmra.mrb[0].mxu0 %v984
      %v1125 = vpop.f32.mrb[0].mxu0
      %v1126 = vadd.f32 %v921, %v1125
      %v1127 = vpop.f32.mrb[0].mxu0
      %v1128 = vpop.f32.mrb[0].mxu0
      %v1129 = vadd.f32 %v921, %v1128
      %v1130 = vpop.f32.mrb[0].mxu0
      %1131 = vmatprep.mubr.bf16.mxu0 0
      %1132 = vmatmul.mubr.bf16.gmra.mrb[0].mxu0 %v987
      %v1133 = vpop.f32.mrb[0].mxu0
      %v1134 = vadd.f32 %v921, %v1133
      %v1135 = vpop.f32.mrb[0].mxu0
      %v1136 = vpop.f32.mrb[0].mxu0
      %v1137 = vadd.f32 %v921, %v1136
      %v1138 = vpop.f32.mrb[0].mxu0
      %1139 = vmatprep.mubr.bf16.mxu0 0
      %1140 = vmatmul.mubr.bf16.gmra.mrb[0].mxu0 %v990
      %v1141 = vpop.f32.mrb[0].mxu0
      %v1142 = vadd.f32 %v921, %v1141
      %v1143 = vpop.f32.mrb[0].mxu0
      %v1144 = vpop.f32.mrb[0].mxu0
      %v1145 = vadd.f32 %v921, %v1144
      %v1146 = vpop.f32.mrb[0].mxu0
      %1147 = vmatprep.mubr.bf16.mxu0 0
      %1148 = vmatmul.mubr.bf16.gmra.mrb[0].mxu0 %v993
      %v1149 = vpop.f32.mrb[0].mxu0
      %v1150 = vadd.f32 %v921, %v1149
      %v1151 = vpop.f32.mrb[0].mxu0
      %v1152 = vpop.f32.mrb[0].mxu0
      %v1153 = vadd.f32 %v921, %v1152
      %v1154 = vpop.f32.mrb[0].mxu0
      %1155 = vdwg.mxu0
      %v1156 = vmax.f32 %v1030, 0.0
      %v1157 = vmax.f32 %v1033, 0.0
      %v1158 = vmax.f32 %v1038, 0.0
      %v1159 = vmax.f32 %v1041, 0.0
      %v1160 = vmax.f32 %v1046, 0.0
      %v1161 = vmax.f32 %v1049, 0.0
      %v1162 = vmax.f32 %v1054, 0.0
      %v1163 = vmax.f32 %v1057, 0.0
      %v1164 = vmax.f32 %v1062, 0.0
      %v1165 = vmax.f32 %v1065, 0.0
      %v1166 = vmax.f32 %v1070, 0.0
      %v1167 = vmax.f32 %v1073, 0.0
      %v1168 = vmax.f32 %v1078, 0.0
      %v1169 = vmax.f32 %v1081, 0.0
      %v1170 = vmax.f32 %v1086, 0.0
      %v1171 = vmax.f32 %v1089, 0.0
      %v1172 = vmax.f32 %v1094, 0.0
      %v1173 = vmax.f32 %v1097, 0.0
      %v1174 = vmax.f32 %v1102, 0.0
      %v1175 = vmax.f32 %v1105, 0.0
      %v1176 = vmax.f32 %v1110, 0.0
      %v1177 = vmax.f32 %v1113, 0.0
      %v1178 = vmax.f32 %v1118, 0.0
      %v1179 = vmax.f32 %v1121, 0.0
      %v1180 = vmax.f32 %v1126, 0.0
      %v1181 = vmax.f32 %v1129, 0.0
      %v1182 = vmax.f32 %v1134, 0.0
      %v1183 = vmax.f32 %v1137, 0.0
      %v1184 = vmax.f32 %v1142, 0.0
      %v1185 = vmax.f32 %v1145, 0.0
      %v1186 = vmax.f32 %v1150, 0.0
      %v1187 = vmax.f32 %v1153, 0.0
      %vm1188 = vcmask 261120
      %1189 = vst.msk [vmem:[%s280] sm:$0xff] %vm1188, %v1156
      %1190 = vst.msk [vmem:[%s280 + $0x8] sm:$0xff] %vm1188, %v1157
      %1191 = vst.msk [vmem:[%s280 + $0x10] sm:$0xff] %vm1188, %v1158
      %1192 = vst.msk [vmem:[%s280 + $0x18] sm:$0xff] %vm1188, %v1159
      %1193 = vst.msk [vmem:[%s280 + $0x20] sm:$0xff] %vm1188, %v1160
      %1194 = vst.msk [vmem:[%s280 + $0x28] sm:$0xff] %vm1188, %v1161
      %1195 = vst.msk [vmem:[%s280 + $0x30] sm:$0xff] %vm1188, %v1162
      %1196 = vst.msk [vmem:[%s280 + $0x38] sm:$0xff] %vm1188, %v1163
      %1197 = vst.msk [vmem:[%s280 + $0x40] sm:$0xff] %vm1188, %v1164
      %1198 = vst.msk [vmem:[%s280 + $0x48] sm:$0xff] %vm1188, %v1165
      %1199 = vst.msk [vmem:[%s280 + $0x50] sm:$0xff] %vm1188, %v1166
      %1200 = vst.msk [vmem:[%s280 + $0x58] sm:$0xff] %vm1188, %v1167
      %1201 = vst.msk [vmem:[%s280 + $0x60] sm:$0xff] %vm1188, %v1168
      %1202 = vst.msk [vmem:[%s280 + $0x68] sm:$0xff] %vm1188, %v1169
      %1203 = vst.msk [vmem:[%s280 + $0x70] sm:$0xff] %vm1188, %v1170
      %1204 = vst.msk [vmem:[%s280 + $0x78] sm:$0xff] %vm1188, %v1171
      %1205 = vst.msk [vmem:[%s280 + $0x80] sm:$0xff] %vm1188, %v1172
      %1206 = vst.msk [vmem:[%s280 + $0x88] sm:$0xff] %vm1188, %v1173
      %1207 = vst.msk [vmem:[%s280 + $0x90] sm:$0xff] %vm1188, %v1174
      %1208 = vst.msk [vmem:[%s280 + $0x98] sm:$0xff] %vm1188, %v1175
      %1209 = vst.msk [vmem:[%s280 + $0xa0] sm:$0xff] %vm1188, %v1176
      %1210 = vst.msk [vmem:[%s280 + $0xa8] sm:$0xff] %vm1188, %v1177
      %1211 = vst.msk [vmem:[%s280 + $0xb0] sm:$0xff] %vm1188, %v1178
      %1212 = vst.msk [vmem:[%s280 + $0xb8] sm:$0xff] %vm1188, %v1179
      %1213 = vst.msk [vmem:[%s280 + $0xc0] sm:$0xff] %vm1188, %v1180
      %1214 = vst.msk [vmem:[%s280 + $0xc8] sm:$0xff] %vm1188, %v1181
      %1215 = vst.msk [vmem:[%s280 + $0xd0] sm:$0xff] %vm1188, %v1182
      %1216 = vst.msk [vmem:[%s280 + $0xd8] sm:$0xff] %vm1188, %v1183
      %1217 = vst.msk [vmem:[%s280 + $0xe0] sm:$0xff] %vm1188, %v1184
      %1218 = vst.msk [vmem:[%s280 + $0xe8] sm:$0xff] %vm1188, %v1185
      %1219 = vst.msk [vmem:[%s280 + $0xf0] sm:$0xff] %vm1188, %v1186
      %1220 = vst.msk [vmem:[%s280 + $0xf8] sm:$0xff] %vm1188, %v1187
      %s1221 = smul.u32 32, %s18
      %p1222 = scmp.lt.s32.totalorder %s1221, 63
      %s1223 = scalar_select %p1222, %s1221, 63
      %s1224 = smul.addr %s1223, 8
      %s1225 = scalar_lea.vmem %s7, %s1224
      // Predicated region
      $region49: #{tpu_custom_call.1} parent=47 // pred_check
        %p1226 = pneg %p188
      $region50: #{tpu_custom_call.1} parent=47 // pred_check_branch
        %1228 = sbr.rel (%p1226) target = $region52
      $region51: #{tpu_custom_call.1} parent=47 // pred_region
        %s1229 = smul.u32 32, %s18
      $region52: #{tpu_custom_call.1} parent=47 // pred_fallthru
        _
    $region48: #{tpu_custom_call.1} parent=5 // pred_fallthru
      _
    %p1230 = scmp.le.s32.totalorder 2, %s13
    // Predicated region
    $region53: #{tpu_custom_call.1} parent=5 // pred_check
      %p1231 = pneg %p1230
    $region54: #{tpu_custom_call.1} parent=5 // pred_check_branch
      %1233 = sbr.rel (%p1231) target = $region56
    $region55: #{tpu_custom_call.1} parent=5 // pred_region
      %s1234 = ssub.s32 %s13, 2
      // Predicated region
      $region57: #{tpu_custom_call.1} parent=55 // pred_check
        %p1235 = pneg %p194
      $region58: #{tpu_custom_call.1} parent=55 // pred_check_branch
        %1237 = sbr.rel (%p1235) target = $region60
      $region59: #{tpu_custom_call.1} parent=55 // pred_region
        %s1238 = smul.u32 32, %s19
        %p1239 = scmp.lt.s32.totalorder %s1238, 63
        %s1240 = scalar_select %p1239, %s1238, 63
        %s1241 = smul.addr %s1240, 8
        %s1242 = scalar_lea.vmem %s7, %s1241
      $region60: #{tpu_custom_call.1} parent=55 // pred_fallthru
        _
    $region56: #{tpu_custom_call.1} parent=5 // pred_fallthru
      _
  $region6: #{tpu_custom_call.1} parent=0 // loop_footer
    %s17 = sadd.s32 1, %s13
  $region7: #{tpu_custom_call.1} parent=0 // loop_footer_branch
    %12 = sbr.rel target = $region3
  $region8: #{tpu_custom_call.1} parent=0 // loop_exit
    _

// kernel: tpu_custom_call.1
$region0: #{tpu_custom_call.1}
  #allocation0 [shape = 'u32[]', space=smem, size = 0x4, offset = 0x4, fixed_abs, tag = 'smem constant byte address 0x4 - core index']
  #allocation1 [shape = 'u32[144,128]{1,0:T(1,128)}', space=vmem, size = 0x12000, scoped, tag = 'internal scratch']
  %s0 = inlined_call_operand.vmem [shape: f32[512,64], index: 0, kind: input, shape index: {}]
  %s1 = inlined_call_operand.vmem [shape: bf16[64,128], index: 1, kind: input, shape index: {}]
  %s2 = inlined_call_operand.vmem [shape: f32[1,128], index: 2, kind: input, shape index: {}]
  %s3 = inlined_call_operand.vmem [shape: bf16[128,64], index: 3, kind: input, shape index: {}]
  %s4 = inlined_call_operand.vmem [shape: f32[1,64], index: 4, kind: input, shape index: {}]
  %s5 = inlined_call_operand.vmem [shape: bf16[64,32], index: 5, kind: input, shape index: {}]
  %s6 = inlined_call_operand.vmem [shape: f32[1,32], index: 6, kind: input, shape index: {}]
  %s7 = inlined_call_operand.vmem [shape: f32[512,32], index: 7, kind: output, shape index: {}]
  %s8 = sld [smem:[#allocation0]]
  $region61: #{tpu_custom_call.1} parent=0
    _
  %s10 = ssub.s32 1, %s8
  %s11 = scalar_select 0, %s10, %s8
  loop: start=0, step=1, limit=4
  $region2: #{tpu_custom_call.1} parent=0 // loop_pre_header
    _
  $region3: #{tpu_custom_call.1} parent=0 // loop_header
    %s13 = sphi 0, %s17
    %p14 = scmp.ge.s32.totalorder %s13, 4
    %s23 = sphi 0, %s25
    %s26 = sphi 0, %s23
    %s27 = sphi 0, %s26
    %s43 = sphi 0, %s27
    %s47 = sphi 0, %s47
    %s49 = sphi 0, %s47
    %s50 = sphi 0, %s49
    %s64 = sphi 0, %s50
    %s68 = sphi 0, %s68
    %s70 = sphi 0, %s68
    %s71 = sphi 0, %s70
    %s85 = sphi 0, %s71
    %s89 = sphi 0, %s89
    %s91 = sphi 0, %s89
    %s92 = sphi 0, %s91
    %s106 = sphi 0, %s92
    %s110 = sphi 0, %s110
    %s112 = sphi 0, %s110
    %s113 = sphi 0, %s112
    %s127 = sphi 0, %s113
    %s131 = sphi 0, %s131
    %s133 = sphi 0, %s131
    %s134 = sphi 0, %s133
    %s148 = sphi 0, %s134
    %s152 = sphi 0, %s152
    %s154 = sphi 0, %s152
    %s155 = sphi 0, %s154
    %s169 = sphi 0, %s155
    %s175 = sphi 0, %s177
    %s178 = sphi 0, %s175
    %s179 = sphi 0, %s178
    %s195 = sphi 0, %s179
  $region4: #{tpu_custom_call.1} parent=0 // loop_header_branch
    %16 = sbr.rel (%p14) target = $region8
  $region5: #{tpu_custom_call.1} parent=0 // loop_body
    %s18 = ssub.s32 %s13, 1
    %s19 = ssub.s32 %s13, 2
    %s20 = sadd.s32 %s13, 1
    %s21 = ssub.s32 %s13, %s20
    %p22 = scmp.eq.s32.totalorder %s21, 0
    %s24 = sadd.s32 %s23, 1
    %s25 = scalar_select %p22, %s23, %s24
    %p28 = pneg %p22
    %p29 = scmp.eq.s32.totalorder %s13, 1
    %p30 = por %p28, %p29
    %p31 = scmp.ne.s32.totalorder %s23, %s26
    %p32 = scmp.eq.s32.totalorder %s13, 0
    %p33 = por %p31, %p32
    %p34 = scmp.ne.s32.totalorder %s23, %s26
    %p35 = scmp.eq.s32.totalorder %s18, 1
    %p36 = por %p34, %p35
    %p37 = scmp.ne.s32.totalorder %s26, %s27
    %p38 = scmp.eq.s32.totalorder %s18, 0
    %p39 = por %p37, %p38
    %p40 = scmp.ne.s32.totalorder %s26, %s27
    %p41 = scmp.eq.s32.totalorder %s19, 1
    %p42 = por %p40, %p41
    %p44 = scmp.ne.s32.totalorder %s27, %s43
    %p45 = scmp.eq.s32.totalorder %s19, 0
    %p46 = por %p44, %p45
    %s48 = sadd.s32 %s47, 1
    %p51 = scmp.eq.s32.totalorder %s13, 1
    %p52 = scmp.ne.s32.totalorder %s47, %s49
    %p53 = scmp.eq.s32.totalorder %s13, 0
    %p54 = por %p52, %p53
    %p55 = scmp.ne.s32.totalorder %s47, %s49
    %p56 = scmp.eq.s32.totalorder %s18, 1
    %p57 = por %p55, %p56
    %p58 = scmp.ne.s32.totalorder %s49, %s50
    %p59 = scmp.eq.s32.totalorder %s18, 0
    %p60 = por %p58, %p59
    %p61 = scmp.ne.s32.totalorder %s49, %s50
    %p62 = scmp.eq.s32.totalorder %s19, 1
    %p63 = por %p61, %p62
    %p65 = scmp.ne.s32.totalorder %s50, %s64
    %p66 = scmp.eq.s32.totalorder %s19, 0
    %p67 = por %p65, %p66
    %s69 = sadd.s32 %s68, 1
    %p72 = scmp.eq.s32.totalorder %s13, 1
    %p73 = scmp.ne.s32.totalorder %s68, %s70
    %p74 = scmp.eq.s32.totalorder %s13, 0
    %p75 = por %p73, %p74
    %p76 = scmp.ne.s32.totalorder %s68, %s70
    %p77 = scmp.eq.s32.totalorder %s18, 1
    %p78 = por %p76, %p77
    %p79 = scmp.ne.s32.totalorder %s70, %s71
    %p80 = scmp.eq.s32.totalorder %s18, 0
    %p81 = por %p79, %p80
    %p82 = scmp.ne.s32.totalorder %s70, %s71
    %p83 = scmp.eq.s32.totalorder %s19, 1
    %p84 = por %p82, %p83
    %p86 = scmp.ne.s32.totalorder %s71, %s85
    %p87 = scmp.eq.s32.totalorder %s19, 0
    %p88 = por %p86, %p87
    %s90 = sadd.s32 %s89, 1
    %p93 = scmp.eq.s32.totalorder %s13, 1
    %p94 = scmp.ne.s32.totalorder %s89, %s91
    %p95 = scmp.eq.s32.totalorder %s13, 0
    %p96 = por %p94, %p95
    %p97 = scmp.ne.s32.totalorder %s89, %s91
    %p98 = scmp.eq.s32.totalorder %s18, 1
    %p99 = por %p97, %p98
    %p100 = scmp.ne.s32.totalorder %s91, %s92
    %p101 = scmp.eq.s32.totalorder %s18, 0
    %p102 = por %p100, %p101
    %p103 = scmp.ne.s32.totalorder %s91, %s92
    %p104 = scmp.eq.s32.totalorder %s19, 1
    %p105 = por %p103, %p104
    %p107 = scmp.ne.s32.totalorder %s92, %s106
    %p108 = scmp.eq.s32.totalorder %s19, 0
    %p109 = por %p107, %p108
    %s111 = sadd.s32 %s110, 1
    %p114 = scmp.eq.s32.totalorder %s13, 1
    %p115 = scmp.ne.s32.totalorder %s110, %s112
    %p116 = scmp.eq.s32.totalorder %s13, 0
    %p117 = por %p115, %p116
    %p118 = scmp.ne.s32.totalorder %s110, %s112
    %p119 = scmp.eq.s32.totalorder %s18, 1
    %p120 = por %p118, %p119
    %p121 = scmp.ne.s32.totalorder %s112, %s113
    %p122 = scmp.eq.s32.totalorder %s18, 0
    %p123 = por %p121, %p122
    %p124 = scmp.ne.s32.totalorder %s112, %s113
    %p125 = scmp.eq.s32.totalorder %s19, 1
    %p126 = por %p124, %p125
    %p128 = scmp.ne.s32.totalorder %s113, %s127
    %p129 = scmp.eq.s32.totalorder %s19, 0
    %p130 = por %p128, %p129
    %s132 = sadd.s32 %s131, 1
    %p135 = scmp.eq.s32.totalorder %s13, 1
    %p136 = scmp.ne.s32.totalorder %s131, %s133
    %p137 = scmp.eq.s32.totalorder %s13, 0
    %p138 = por %p136, %p137
    %p139 = scmp.ne.s32.totalorder %s131, %s133
    %p140 = scmp.eq.s32.totalorder %s18, 1
    %p141 = por %p139, %p140
    %p142 = scmp.ne.s32.totalorder %s133, %s134
    %p143 = scmp.eq.s32.totalorder %s18, 0
    %p144 = por %p142, %p143
    %p145 = scmp.ne.s32.totalorder %s133, %s134
    %p146 = scmp.eq.s32.totalorder %s19, 1
    %p147 = por %p145, %p146
    %p149 = scmp.ne.s32.totalorder %s134, %s148
    %p150 = scmp.eq.s32.totalorder %s19, 0
    %p151 = por %p149, %p150
    %s153 = sadd.s32 %s152, 1
    %p156 = scmp.eq.s32.totalorder %s13, 1
    %p157 = scmp.ne.s32.totalorder %s152, %s154
    %p158 = scmp.eq.s32.totalorder %s13, 0
    %p159 = por %p157, %p158
    %p160 = scmp.ne.s32.totalorder %s152, %s154
    %p161 = scmp.eq.s32.totalorder %s18, 1
    %p162 = por %p160, %p161
    %p163 = scmp.ne.s32.totalorder %s154, %s155
    %p164 = scmp.eq.s32.totalorder %s18, 0
    %p165 = por %p163, %p164
    %p166 = scmp.ne.s32.totalorder %s154, %s155
    %p167 = scmp.eq.s32.totalorder %s19, 1
    %p168 = por %p166, %p167
    %p170 = scmp.ne.s32.totalorder %s155, %s169
    %p171 = scmp.eq.s32.totalorder %s19, 0
    %p172 = por %p170, %p171
    %s173 = ssub.s32 %s13, %s20
    %p174 = scmp.eq.s32.totalorder %s173, 0
    %s176 = sadd.s32 %s175, 1
    %s177 = scalar_select %p174, %s175, %s176
    %p180 = pneg %p174
    %p181 = scmp.eq.s32.totalorder %s13, 1
    %p182 = por %p180, %p181
    %p183 = scmp.ne.s32.totalorder %s175, %s178
    %p184 = scmp.eq.s32.totalorder %s13, 0
    %p185 = por %p183, %p184
    %p186 = scmp.ne.s32.totalorder %s175, %s178
    %p187 = scmp.eq.s32.totalorder %s18, 1
    %p188 = por %p186, %p187
    %p189 = scmp.ne.s32.totalorder %s178, %s179
    %p190 = scmp.eq.s32.totalorder %s18, 0
    %p191 = por %p189, %p190
    %p192 = scmp.ne.s32.totalorder %s178, %s179
    %p193 = scmp.eq.s32.totalorder %s19, 1
    %p194 = por %p192, %p193
    %p196 = scmp.ne.s32.totalorder %s179, %s195
    %p197 = scmp.eq.s32.totalorder %s19, 0
    %p198 = por %p196, %p197
    %p199 = scmp.le.s32.totalorder 1, %s13
    %p200 = scmp.lt.s32.totalorder %s13, 3
    %p201 = pnand %p199, %p200
    %p202 = pneg %p201
    // Predicated region
    $region9: #{tpu_custom_call.1} parent=5 // pred_check
      _
    $region10: #{tpu_custom_call.1} parent=5 // pred_check_branch
      %204 = sbr.rel (%p201) target = $region12
    $region11: #{tpu_custom_call.1} parent=5 // pred_region
      %s205 = ssub.s32 %s13, 1
      // Predicated region
      $region13: #{tpu_custom_call.1} parent=11 // pred_check
        %p206 = pneg %p60
      $region14: #{tpu_custom_call.1} parent=11 // pred_check_branch
        %208 = sbr.rel (%p206) target = $region16
      $region15: #{tpu_custom_call.1} parent=11 // pred_region
        _
      $region16: #{tpu_custom_call.1} parent=11 // pred_fallthru
        _
      // Predicated region
      $region17: #{tpu_custom_call.1} parent=11 // pred_check
        %p209 = pneg %p81
      $region18: #{tpu_custom_call.1} parent=11 // pred_check_branch
        %211 = sbr.rel (%p209) target = $region20
      $region19: #{tpu_custom_call.1} parent=11 // pred_region
        _
      $region20: #{tpu_custom_call.1} parent=11 // pred_fallthru
        _
      // Predicated region
      $region21: #{tpu_custom_call.1} parent=11 // pred_check
        %p212 = pneg %p102
      $region22: #{tpu_custom_call.1} parent=11 // pred_check_branch
        %214 = sbr.rel (%p212) target = $region24
      $region23: #{tpu_custom_call.1} parent=11 // pred_region
        _
      $region24: #{tpu_custom_call.1} parent=11 // pred_fallthru
        _
      // Predicated region
      $region25: #{tpu_custom_call.1} parent=11 // pred_check
        %p215 = pneg %p123
      $region26: #{tpu_custom_call.1} parent=11 // pred_check_branch
        %217 = sbr.rel (%p215) target = $region28
      $region27: #{tpu_custom_call.1} parent=11 // pred_region
        _
      $region28: #{tpu_custom_call.1} parent=11 // pred_fallthru
        _
      // Predicated region
      $region29: #{tpu_custom_call.1} parent=11 // pred_check
        %p218 = pneg %p144
      $region30: #{tpu_custom_call.1} parent=11 // pred_check_branch
        %220 = sbr.rel (%p218) target = $region32
      $region31: #{tpu_custom_call.1} parent=11 // pred_region
        _
      $region32: #{tpu_custom_call.1} parent=11 // pred_fallthru
        _
      // Predicated region
      $region33: #{tpu_custom_call.1} parent=11 // pred_check
        %p221 = pneg %p165
      $region34: #{tpu_custom_call.1} parent=11 // pred_check_branch
        %223 = sbr.rel (%p221) target = $region36
      $region35: #{tpu_custom_call.1} parent=11 // pred_region
        _
      $region36: #{tpu_custom_call.1} parent=11 // pred_fallthru
        _
    $region12: #{tpu_custom_call.1} parent=5 // pred_fallthru
      _
    %p224 = scmp.lt.s32.totalorder %s13, 2
    // Predicated region
    $region37: #{tpu_custom_call.1} parent=5 // pred_check
      %p225 = pneg %p224
    $region38: #{tpu_custom_call.1} parent=5 // pred_check_branch
      %227 = sbr.rel (%p225) target = $region40
    $region39: #{tpu_custom_call.1} parent=5 // pred_region
      // Predicated region
      $region41: #{tpu_custom_call.1} parent=39 // pred_check
        %p228 = pneg %p33
      $region42: #{tpu_custom_call.1} parent=39 // pred_check_branch
        %230 = sbr.rel (%p228) target = $region44
      $region43: #{tpu_custom_call.1} parent=39 // pred_region
        %s231 = smul.u32 32, %s13
        %p232 = scmp.lt.s32.totalorder %s231, 63
        %s233 = scalar_select %p232, %s231, 63
        %s234 = smul.addr %s233, 8
        %s235 = scalar_lea.vmem %s0, %s234
        %s236 = smul.u32 32, %s13
      $region44: #{tpu_custom_call.1} parent=39 // pred_fallthru
        _
    $region40: #{tpu_custom_call.1} parent=5 // pred_fallthru
      _
    %p237 = scmp.le.s32.totalorder 1, %s13
    %p238 = scmp.lt.s32.totalorder %s13, 3
    %p239 = pnand %p237, %p238
    %p240 = pneg %p239
    // Predicated region
    $region45: #{tpu_custom_call.1} parent=5 // pred_check
      _
    $region46: #{tpu_custom_call.1} parent=5 // pred_check_branch
      %242 = sbr.rel (%p239) target = $region48
    $region47: #{tpu_custom_call.1} parent=5 // pred_region
      %s243 = ssub.s32 %s13, 1
      %s244 = smul.u32 32, %s18
      %p245 = scmp.lt.s32.totalorder %s244, 63
      %s246 = scalar_select %p245, %s244, 63
      %s247 = smul.addr %s246, 8
      %s248 = scalar_lea.vmem %s0, %s247
      %p249 = pneg %p39
      %p250 = pneg %p36
      %p251 = pneg %p60
      %p252 = pneg %p57
      %p253 = pneg %p81
      %p254 = pneg %p78
      %p255 = pneg %p102
      %p256 = pneg %p99
      %p257 = pneg %p123
      %p258 = pneg %p120
      %p259 = pneg %p144
      %p260 = pneg %p141
      %p261 = pneg %p165
      %p262 = pneg %p162
      %p263 = pneg %p191
      %p264 = pneg %p188
      %s265 = smul.u32 32, %s18
      %p266 = scmp.lt.s32.totalorder %s265, 63
      %s267 = scalar_select %p266, %s265, 63
      %s268 = smul.addr %s267, 8
      %s269 = scalar_lea.vmem %s7, %s268
      %s270 = smul.u32 32, %s18
      %p271 = scmp.lt.s32.totalorder %s270, 63
      %s272 = scalar_select %p271, %s270, 63
      %s273 = smul.addr %s272, 8
      %s274 = scalar_lea.vmem %s0, %s273
      %s275 = smul.u32 32, %s18
      %s276 = smul.u32 32, %s18
      %p277 = scmp.lt.s32.totalorder %s276, 63
      %s278 = scalar_select %p277, %s276, 63
      %s279 = smul.addr %s278, 8
      %s280 = scalar_lea.vmem %s7, %s279
      %s281 = smul.u32 32, %s18
      %v283 = vld [vmem:[%s274] sm:$0xff]
      %v284 = vld [vmem:[%s274 + $0x8] sm:$0xff]
      %v285 = vld [vmem:[%s274 + $0x10] sm:$0xff]
      %v286 = vld [vmem:[%s274 + $0x18] sm:$0xff]
      %v287 = vld [vmem:[%s274 + $0x20] sm:$0xff]
      %v288 = vld [vmem:[%s274 + $0x28] sm:$0xff]
      %v289 = vld [vmem:[%s274 + $0x30] sm:$0xff]
      %v290 = vld [vmem:[%s274 + $0x38] sm:$0xff]
      %v291 = vld [vmem:[%s274 + $0x40] sm:$0xff]
      %v292 = vld [vmem:[%s274 + $0x48] sm:$0xff]
      %v293 = vld [vmem:[%s274 + $0x50] sm:$0xff]
      %v294 = vld [vmem:[%s274 + $0x58] sm:$0xff]
      %v295 = vld [vmem:[%s274 + $0x60] sm:$0xff]
      %v296 = vld [vmem:[%s274 + $0x68] sm:$0xff]
      %v297 = vld [vmem:[%s274 + $0x70] sm:$0xff]
      %v298 = vld [vmem:[%s274 + $0x78] sm:$0xff]
      %v299 = vld [vmem:[%s274 + $0x80] sm:$0xff]
      %v300 = vld [vmem:[%s274 + $0x88] sm:$0xff]
      %v301 = vld [vmem:[%s274 + $0x90] sm:$0xff]
      %v302 = vld [vmem:[%s274 + $0x98] sm:$0xff]
      %v303 = vld [vmem:[%s274 + $0xa0] sm:$0xff]
      %v304 = vld [vmem:[%s274 + $0xa8] sm:$0xff]
      %v305 = vld [vmem:[%s274 + $0xb0] sm:$0xff]
      %v306 = vld [vmem:[%s274 + $0xb8] sm:$0xff]
      %v307 = vld [vmem:[%s274 + $0xc0] sm:$0xff]
      %v308 = vld [vmem:[%s274 + $0xc8] sm:$0xff]
      %v309 = vld [vmem:[%s274 + $0xd0] sm:$0xff]
      %v310 = vld [vmem:[%s274 + $0xd8] sm:$0xff]
      %v311 = vld [vmem:[%s274 + $0xe0] sm:$0xff]
      %v312 = vld [vmem:[%s274 + $0xe8] sm:$0xff]
      %v313 = vld [vmem:[%s274 + $0xf0] sm:$0xff]
      %v314 = vld [vmem:[%s274 + $0xf8] sm:$0xff]
      %v315 = vpack.c.bf16 %v284, %v283
      %v316 = vpack.c.bf16 %v286, %v285
      %v317 = vpack.c.bf16 %v288, %v287
      %v318 = vpack.c.bf16 %v290, %v289
      %v319 = vpack.c.bf16 %v292, %v291
      %v320 = vpack.c.bf16 %v294, %v293
      %v321 = vpack.c.bf16 %v296, %v295
      %v322 = vpack.c.bf16 %v298, %v297
      %v323 = vpack.c.bf16 %v300, %v299
      %v324 = vpack.c.bf16 %v302, %v301
      %v325 = vpack.c.bf16 %v304, %v303
      %v326 = vpack.c.bf16 %v306, %v305
      %v327 = vpack.c.bf16 %v308, %v307
      %v328 = vpack.c.bf16 %v310, %v309
      %v329 = vpack.c.bf16 %v312, %v311
      %v330 = vpack.c.bf16 %v314, %v313
      %v331 = vld [vmem:[%s1] sm:$0xf]
      %v332 = vld [vmem:[%s1 + $0x4] sm:$0xf]
      %v333 = vld [vmem:[%s1 + $0x8] sm:$0xf]
      %v334 = vld [vmem:[%s1 + $0xc] sm:$0xf]
      %v335 = vld [vmem:[%s1 + $0x10] sm:$0xf]
      %v336 = vld [vmem:[%s1 + $0x14] sm:$0xf]
      %v337 = vld [vmem:[%s1 + $0x18] sm:$0xf]
      %v338 = vld [vmem:[%s1 + $0x1c] sm:$0xf]
      %v339 = vld [vmem:[%s2] sm:$0x1]
      %v341 = vlaneseq
      %v342 = vshrl.u32 %v341, 7
      %v343 = vsub.s32 0, %v342
      %v344 = vrot.slane %v339, %v343
      %v354 = vunpack.c.l.b16 %v331
      %v355 = vunpack.c.l.b16 %v332
      %v356 = vunpack.c.l.b16 %v333
      %v357 = vunpack.c.l.b16 %v334
      %v358 = vunpack.c.l.b16 %v335
      %v359 = vunpack.c.l.b16 %v336
      %v360 = vunpack.c.l.b16 %v337
      %v361 = vunpack.c.l.b16 %v338
      %v362 = vpack.c.b16 %v355, %v354
      %v363 = vpack.c.b16 %v357, %v356
      %v364 = vpack.c.b16 %v359, %v358
      %v365 = vpack.c.b16 %v361, %v360
      %vm370 = vcmask 523264
      %v372 = vsel %vm370, %v315, 0
      %v375 = vsel %vm370, %v316, 0
      %v378 = vsel %vm370, %v317, 0
      %v381 = vsel %vm370, %v318, 0
      %v384 = vsel %vm370, %v319, 0
      %v387 = vsel %vm370, %v320, 0
      %v390 = vsel %vm370, %v321, 0
      %v393 = vsel %vm370, %v322, 0
      %v396 = vsel %vm370, %v323, 0
      %v399 = vsel %vm370, %v324, 0
      %v402 = vsel %vm370, %v325, 0
      %v405 = vsel %vm370, %v326, 0
      %v408 = vsel %vm370, %v327, 0
      %v411 = vsel %vm370, %v328, 0
      %v414 = vsel %vm370, %v329, 0
      %v417 = vsel %vm370, %v330, 0
      %419 = vmatprep.subr.bf16.mxu0 0
      %420 = vmatpush1.bf16.msra.mxu0 %v362
      %421 = vmatprep.subr.bf16.mxu0 0
      %422 = vmatpush1.bf16.msra.mxu0 %v363
      %423 = vmatprep.subr.bf16.mxu0 0
      %424 = vmatpush1.bf16.msra.mxu0 %v364
      %425 = vmatprep.subr.bf16.mxu0 0
      %426 = vmatpush1.bf16.msra.mxu0 %v365
      %427 = vmatprep.subr.bf16.mxu0 0
      %428 = vmatpush1.bf16.msra.mxu0 0
      %429 = vmatprep.subr.bf16.mxu0 0
      %430 = vmatpush1.bf16.msra.mxu0 0
      %431 = vmatprep.subr.bf16.mxu0 0
      %432 = vmatpush1.bf16.msra.mxu0 0
      %433 = vmatprep.subr.bf16.mxu0 0
      %434 = vmatpush1.bf16.msra.mxu0 0
      %435 = vmatprep.subr.bf16.mxu0 0
      %436 = vmatpush1.bf16.msra.mxu0 0
      %437 = vmatprep.subr.bf16.mxu0 0
      %438 = vmatpush1.bf16.msra.mxu0 0
      %439 = vmatprep.subr.bf16.mxu0 0
      %440 = vmatpush1.bf16.msra.mxu0 0
      %441 = vmatprep.subr.bf16.mxu0 0
      %442 = vmatpush1.bf16.msra.mxu0 0
      %443 = vmatprep.subr.bf16.mxu0 0
      %444 = vmatpush1.bf16.msra.mxu0 0
      %445 = vmatprep.subr.bf16.mxu0 0
      %446 = vmatpush1.bf16.msra.mxu0 0
      %447 = vmatprep.subr.bf16.mxu0 0
      %448 = vmatpush1.bf16.msra.mxu0 0
      %449 = vmatprep.subr.bf16.mxu0 0
      %450 = vmatpush1.bf16.msra.mxu0 0
      %451 = vmatprep.mubr.bf16.mxu0 0
      %452 = vmatmul.mubr.bf16.gmra.mrb[0].mxu0 %v372
      %v453 = vpop.f32.mrb[0].mxu0
      %v454 = vadd.f32 %v344, %v453
      %v455 = vpop.f32.mrb[0].mxu0
      %v456 = vpop.f32.mrb[0].mxu0
      %v457 = vadd.f32 %v344, %v456
      %v458 = vpop.f32.mrb[0].mxu0
      %459 = vmatprep.mubr.bf16.mxu0 0
      %460 = vmatmul.mubr.bf16.gmra.mrb[0].mxu0 %v375
      %v461 = vpop.f32.mrb[0].mxu0
      %v462 = vadd.f32 %v344, %v461
      %v463 = vpop.f32.mrb[0].mxu0
      %v464 = vpop.f32.mrb[0].mxu0
      %v465 = vadd.f32 %v344, %v464
      %v466 = vpop.f32.mrb[0].mxu0
      %467 = vmatprep.mubr.bf16.mxu0 0
      %468 = vmatmul.mubr.bf16.gmra.mrb[0].mxu0 %v378
      %v469 = vpop.f32.mrb[0].mxu0
      %v470 = vadd.f32 %v344, %v469
      %v471 = vpop.f32.mrb[0].mxu0
      %v472 = vpop.f32.mrb[0].mxu0
      %v473 = vadd.f32 %v344, %v472
      %v474 = vpop.f32.mrb[0].mxu0
      %475 = vmatprep.mubr.bf16.mxu0 0
      %476 = vmatmul.mubr.bf16.gmra.mrb[0].mxu0 %v381
      %v477 = vpop.f32.mrb[0].mxu0
      %v478 = vadd.f32 %v344, %v477
      %v479 = vpop.f32.mrb[0].mxu0
      %v480 = vpop.f32.mrb[0].mxu0
      %v481 = vadd.f32 %v344, %v480
      %v482 = vpop.f32.mrb[0].mxu0
      %483 = vmatprep.mubr.bf16.mxu0 0
      %484 = vmatmul.mubr.bf16.gmra.mrb[0].mxu0 %v384
      %v485 = vpop.f32.mrb[0].mxu0
      %v486 = vadd.f32 %v344, %v485
      %v487 = vpop.f32.mrb[0].mxu0
      %v488 = vpop.f32.mrb[0].mxu0
      %v489 = vadd.f32 %v344, %v488
      %v490 = vpop.f32.mrb[0].mxu0
      %491 = vmatprep.mubr.bf16.mxu0 0
      %492 = vmatmul.mubr.bf16.gmra.mrb[0].mxu0 %v387
      %v493 = vpop.f32.mrb[0].mxu0
      %v494 = vadd.f32 %v344, %v493
      %v495 = vpop.f32.mrb[0].mxu0
      %v496 = vpop.f32.mrb[0].mxu0
      %v497 = vadd.f32 %v344, %v496
      %v498 = vpop.f32.mrb[0].mxu0
      %499 = vmatprep.mubr.bf16.mxu0 0
      %500 = vmatmul.mubr.bf16.gmra.mrb[0].mxu0 %v390
      %v501 = vpop.f32.mrb[0].mxu0
      %v502 = vadd.f32 %v344, %v501
      %v503 = vpop.f32.mrb[0].mxu0
      %v504 = vpop.f32.mrb[0].mxu0
      %v505 = vadd.f32 %v344, %v504
      %v506 = vpop.f32.mrb[0].mxu0
      %507 = vmatprep.mubr.bf16.mxu0 0
      %508 = vmatmul.mubr.bf16.gmra.mrb[0].mxu0 %v393
      %v509 = vpop.f32.mrb[0].mxu0
      %v510 = vadd.f32 %v344, %v509
      %v511 = vpop.f32.mrb[0].mxu0
      %v512 = vpop.f32.mrb[0].mxu0
      %v513 = vadd.f32 %v344, %v512
      %v514 = vpop.f32.mrb[0].mxu0
      %515 = vmatprep.mubr.bf16.mxu0 0
      %516 = vmatmul.mubr.bf16.gmra.mrb[0].mxu0 %v396
      %v517 = vpop.f32.mrb[0].mxu0
      %v518 = vadd.f32 %v344, %v517
      %v519 = vpop.f32.mrb[0].mxu0
      %v520 = vpop.f32.mrb[0].mxu0
      %v521 = vadd.f32 %v344, %v520
      %v522 = vpop.f32.mrb[0].mxu0
      %523 = vmatprep.mubr.bf16.mxu0 0
      %524 = vmatmul.mubr.bf16.gmra.mrb[0].mxu0 %v399
      %v525 = vpop.f32.mrb[0].mxu0
      %v526 = vadd.f32 %v344, %v525
      %v527 = vpop.f32.mrb[0].mxu0
      %v528 = vpop.f32.mrb[0].mxu0
      %v529 = vadd.f32 %v344, %v528
      %v530 = vpop.f32.mrb[0].mxu0
      %531 = vmatprep.mubr.bf16.mxu0 0
      %532 = vmatmul.mubr.bf16.gmra.mrb[0].mxu0 %v402
      %v533 = vpop.f32.mrb[0].mxu0
      %v534 = vadd.f32 %v344, %v533
      %v535 = vpop.f32.mrb[0].mxu0
      %v536 = vpop.f32.mrb[0].mxu0
      %v537 = vadd.f32 %v344, %v536
      %v538 = vpop.f32.mrb[0].mxu0
      %539 = vmatprep.mubr.bf16.mxu0 0
      %540 = vmatmul.mubr.bf16.gmra.mrb[0].mxu0 %v405
      %v541 = vpop.f32.mrb[0].mxu0
      %v542 = vadd.f32 %v344, %v541
      %v543 = vpop.f32.mrb[0].mxu0
      %v544 = vpop.f32.mrb[0].mxu0
      %v545 = vadd.f32 %v344, %v544
      %v546 = vpop.f32.mrb[0].mxu0
      %547 = vmatprep.mubr.bf16.mxu0 0
      %548 = vmatmul.mubr.bf16.gmra.mrb[0].mxu0 %v408
      %v549 = vpop.f32.mrb[0].mxu0
      %v550 = vadd.f32 %v344, %v549
      %v551 = vpop.f32.mrb[0].mxu0
      %v552 = vpop.f32.mrb[0].mxu0
      %v553 = vadd.f32 %v344, %v552
      %v554 = vpop.f32.mrb[0].mxu0
      %555 = vmatprep.mubr.bf16.mxu0 0
      %556 = vmatmul.mubr.bf16.gmra.mrb[0].mxu0 %v411
      %v557 = vpop.f32.mrb[0].mxu0
      %v558 = vadd.f32 %v344, %v557
      %v559 = vpop.f32.mrb[0].mxu0
      %v560 = vpop.f32.mrb[0].mxu0
      %v561 = vadd.f32 %v344, %v560
      %v562 = vpop.f32.mrb[0].mxu0
      %563 = vmatprep.mubr.bf16.mxu0 0
      %564 = vmatmul.mubr.bf16.gmra.mrb[0].mxu0 %v414
      %v565 = vpop.f32.mrb[0].mxu0
      %v566 = vadd.f32 %v344, %v565
      %v567 = vpop.f32.mrb[0].mxu0
      %v568 = vpop.f32.mrb[0].mxu0
      %v569 = vadd.f32 %v344, %v568
      %v570 = vpop.f32.mrb[0].mxu0
      %571 = vmatprep.mubr.bf16.mxu0 0
      %572 = vmatmul.mubr.bf16.gmra.mrb[0].mxu0 %v417
      %v573 = vpop.f32.mrb[0].mxu0
      %v574 = vadd.f32 %v344, %v573
      %v575 = vpop.f32.mrb[0].mxu0
      %v576 = vpop.f32.mrb[0].mxu0
      %v577 = vadd.f32 %v344, %v576
      %v578 = vpop.f32.mrb[0].mxu0
      %579 = vdwg.mxu0
      %v580 = vmax.f32 %v454, 0.0
      %v581 = vmax.f32 %v457, 0.0
      %v582 = vmax.f32 %v462, 0.0
      %v583 = vmax.f32 %v465, 0.0
      %v584 = vmax.f32 %v470, 0.0
      %v585 = vmax.f32 %v473, 0.0
      %v586 = vmax.f32 %v478, 0.0
      %v587 = vmax.f32 %v481, 0.0
      %v588 = vmax.f32 %v486, 0.0
      %v589 = vmax.f32 %v489, 0.0
      %v590 = vmax.f32 %v494, 0.0
      %v591 = vmax.f32 %v497, 0.0
      %v592 = vmax.f32 %v502, 0.0
      %v593 = vmax.f32 %v505, 0.0
      %v594 = vmax.f32 %v510, 0.0
      %v595 = vmax.f32 %v513, 0.0
      %v596 = vmax.f32 %v518, 0.0
      %v597 = vmax.f32 %v521, 0.0
      %v598 = vmax.f32 %v526, 0.0
      %v599 = vmax.f32 %v529, 0.0
      %v600 = vmax.f32 %v534, 0.0
      %v601 = vmax.f32 %v537, 0.0
      %v602 = vmax.f32 %v542, 0.0
      %v603 = vmax.f32 %v545, 0.0
      %v604 = vmax.f32 %v550, 0.0
      %v605 = vmax.f32 %v553, 0.0
      %v606 = vmax.f32 %v558, 0.0
      %v607 = vmax.f32 %v561, 0.0
      %v608 = vmax.f32 %v566, 0.0
      %v609 = vmax.f32 %v569, 0.0
      %v610 = vmax.f32 %v574, 0.0
      %v611 = vmax.f32 %v577, 0.0
      %v612 = vpack.c.bf16 %v581, %v580
      %v613 = vpack.c.bf16 %v583, %v582
      %v614 = vpack.c.bf16 %v585, %v584
      %v615 = vpack.c.bf16 %v587, %v586
      %v616 = vpack.c.bf16 %v589, %v588
      %v617 = vpack.c.bf16 %v591, %v590
      %v618 = vpack.c.bf16 %v593, %v592
      %v619 = vpack.c.bf16 %v595, %v594
      %v620 = vpack.c.bf16 %v597, %v596
      %v621 = vpack.c.bf16 %v599, %v598
      %v622 = vpack.c.bf16 %v601, %v600
      %v623 = vpack.c.bf16 %v603, %v602
      %v624 = vpack.c.bf16 %v605, %v604
      %v625 = vpack.c.bf16 %v607, %v606
      %v626 = vpack.c.bf16 %v609, %v608
      %v627 = vpack.c.bf16 %v611, %v610
      %v628 = vld [vmem:[%s3] sm:$0xf]
      %v629 = vld [vmem:[%s3 + $0x4] sm:$0xf]
      %v630 = vld [vmem:[%s3 + $0x8] sm:$0xf]
      %v631 = vld [vmem:[%s3 + $0xc] sm:$0xf]
      %v632 = vld [vmem:[%s3 + $0x10] sm:$0xf]
      %v633 = vld [vmem:[%s3 + $0x14] sm:$0xf]
      %v634 = vld [vmem:[%s3 + $0x18] sm:$0xf]
      %v635 = vld [vmem:[%s3 + $0x1c] sm:$0xf]
      %v636 = vld [vmem:[%s3 + $0x20] sm:$0xf]
      %v637 = vld [vmem:[%s3 + $0x24] sm:$0xf]
      %v638 = vld [vmem:[%s3 + $0x28] sm:$0xf]
      %v639 = vld [vmem:[%s3 + $0x2c] sm:$0xf]
      %v640 = vld [vmem:[%s3 + $0x30] sm:$0xf]
      %v641 = vld [vmem:[%s3 + $0x34] sm:$0xf]
      %v642 = vld [vmem:[%s3 + $0x38] sm:$0xf]
      %v643 = vld [vmem:[%s3 + $0x3c] sm:$0xf]
      %v644 = vld [vmem:[%s4] sm:$0x1]
      %v646 = vlaneseq
      %v647 = vshrl.u32 %v646, 7
      %v648 = vsub.s32 0, %v647
      %v649 = vrot.slane %v644, %v648
      %v667 = vunpack.c.l.b16 %v628
      %v668 = vunpack.c.l.b16 %v629
      %v669 = vunpack.c.l.b16 %v630
      %v670 = vunpack.c.l.b16 %v631
      %v671 = vunpack.c.l.b16 %v632
      %v672 = vunpack.c.l.b16 %v633
      %v673 = vunpack.c.l.b16 %v634
      %v674 = vunpack.c.l.b16 %v635
      %v675 = vunpack.c.l.b16 %v636
      %v676 = vunpack.c.l.b16 %v637
      %v677 = vunpack.c.l.b16 %v638
      %v678 = vunpack.c.l.b16 %v639
      %v679 = vunpack.c.l.b16 %v640
      %v680 = vunpack.c.l.b16 %v641
      %v681 = vunpack.c.l.b16 %v642
      %v682 = vunpack.c.l.b16 %v643
      %v683 = vpack.c.b16 %v668, %v667
      %v684 = vpack.c.b16 %v670, %v669
      %v685 = vpack.c.b16 %v672, %v671
      %v686 = vpack.c.b16 %v674, %v673
      %v687 = vpack.c.b16 %v676, %v675
      %v688 = vpack.c.b16 %v678, %v677
      %v689 = vpack.c.b16 %v680, %v679
      %v690 = vpack.c.b16 %v682, %v681
      %699 = vmatprep.subr.bf16.mxu0 0
      %700 = vmatpush1.bf16.msra.mxu0 %v683
      %701 = vmatprep.subr.bf16.mxu0 0
      %702 = vmatpush1.bf16.msra.mxu0 %v684
      %703 = vmatprep.subr.bf16.mxu0 0
      %704 = vmatpush1.bf16.msra.mxu0 %v685
      %705 = vmatprep.subr.bf16.mxu0 0
      %706 = vmatpush1.bf16.msra.mxu0 %v686
      %707 = vmatprep.subr.bf16.mxu0 0
      %708 = vmatpush1.bf16.msra.mxu0 %v687
      %709 = vmatprep.subr.bf16.mxu0 0
      %710 = vmatpush1.bf16.msra.mxu0 %v688
      %711 = vmatprep.subr.bf16.mxu0 0
      %712 = vmatpush1.bf16.msra.mxu0 %v689
      %713 = vmatprep.subr.bf16.mxu0 0
      %714 = vmatpush1.bf16.msra.mxu0 %v690
      %715 = vmatprep.subr.bf16.mxu0 0
      %716 = vmatpush1.bf16.msra.mxu0 0
      %717 = vmatprep.subr.bf16.mxu0 0
      %718 = vmatpush1.bf16.msra.mxu0 0
      %719 = vmatprep.subr.bf16.mxu0 0
      %720 = vmatpush1.bf16.msra.mxu0 0
      %721 = vmatprep.subr.bf16.mxu0 0
      %722 = vmatpush1.bf16.msra.mxu0 0
      %723 = vmatprep.subr.bf16.mxu0 0
      %724 = vmatpush1.bf16.msra.mxu0 0
      %725 = vmatprep.subr.bf16.mxu0 0
      %726 = vmatpush1.bf16.msra.mxu0 0
      %727 = vmatprep.subr.bf16.mxu0 0
      %728 = vmatpush1.bf16.msra.mxu0 0
      %729 = vmatprep.subr.bf16.mxu0 0
      %730 = vmatpush1.bf16.msra.mxu0 0
      %731 = vmatprep.mubr.bf16.mxu0 0
      %732 = vmatmul.mubr.bf16.gmra.mrb[0].mxu0 %v612
      %v733 = vpop.f32.mrb[0].mxu0
      %v734 = vadd.f32 %v649, %v733
      %v735 = vpop.f32.mrb[0].mxu0
      %v736 = vpop.f32.mrb[0].mxu0
      %v737 = vadd.f32 %v649, %v736
      %v738 = vpop.f32.mrb[0].mxu0
      %739 = vmatprep.mubr.bf16.mxu0 0
      %740 = vmatmul.mubr.bf16.gmra.mrb[0].mxu0 %v613
      %v741 = vpop.f32.mrb[0].mxu0
      %v742 = vadd.f32 %v649, %v741
      %v743 = vpop.f32.mrb[0].mxu0
      %v744 = vpop.f32.mrb[0].mxu0
      %v745 = vadd.f32 %v649, %v744
      %v746 = vpop.f32.mrb[0].mxu0
      %747 = vmatprep.mubr.bf16.mxu0 0
      %748 = vmatmul.mubr.bf16.gmra.mrb[0].mxu0 %v614
      %v749 = vpop.f32.mrb[0].mxu0
      %v750 = vadd.f32 %v649, %v749
      %v751 = vpop.f32.mrb[0].mxu0
      %v752 = vpop.f32.mrb[0].mxu0
      %v753 = vadd.f32 %v649, %v752
      %v754 = vpop.f32.mrb[0].mxu0
      %755 = vmatprep.mubr.bf16.mxu0 0
      %756 = vmatmul.mubr.bf16.gmra.mrb[0].mxu0 %v615
      %v757 = vpop.f32.mrb[0].mxu0
      %v758 = vadd.f32 %v649, %v757
      %v759 = vpop.f32.mrb[0].mxu0
      %v760 = vpop.f32.mrb[0].mxu0
      %v761 = vadd.f32 %v649, %v760
      %v762 = vpop.f32.mrb[0].mxu0
      %763 = vmatprep.mubr.bf16.mxu0 0
      %764 = vmatmul.mubr.bf16.gmra.mrb[0].mxu0 %v616
      %v765 = vpop.f32.mrb[0].mxu0
      %v766 = vadd.f32 %v649, %v765
      %v767 = vpop.f32.mrb[0].mxu0
      %v768 = vpop.f32.mrb[0].mxu0
      %v769 = vadd.f32 %v649, %v768
      %v770 = vpop.f32.mrb[0].mxu0
      %771 = vmatprep.mubr.bf16.mxu0 0
      %772 = vmatmul.mubr.bf16.gmra.mrb[0].mxu0 %v617
      %v773 = vpop.f32.mrb[0].mxu0
      %v774 = vadd.f32 %v649, %v773
      %v775 = vpop.f32.mrb[0].mxu0
      %v776 = vpop.f32.mrb[0].mxu0
      %v777 = vadd.f32 %v649, %v776
      %v778 = vpop.f32.mrb[0].mxu0
      %779 = vmatprep.mubr.bf16.mxu0 0
      %780 = vmatmul.mubr.bf16.gmra.mrb[0].mxu0 %v618
      %v781 = vpop.f32.mrb[0].mxu0
      %v782 = vadd.f32 %v649, %v781
      %v783 = vpop.f32.mrb[0].mxu0
      %v784 = vpop.f32.mrb[0].mxu0
      %v785 = vadd.f32 %v649, %v784
      %v786 = vpop.f32.mrb[0].mxu0
      %787 = vmatprep.mubr.bf16.mxu0 0
      %788 = vmatmul.mubr.bf16.gmra.mrb[0].mxu0 %v619
      %v789 = vpop.f32.mrb[0].mxu0
      %v790 = vadd.f32 %v649, %v789
      %v791 = vpop.f32.mrb[0].mxu0
      %v792 = vpop.f32.mrb[0].mxu0
      %v793 = vadd.f32 %v649, %v792
      %v794 = vpop.f32.mrb[0].mxu0
      %795 = vmatprep.mubr.bf16.mxu0 0
      %796 = vmatmul.mubr.bf16.gmra.mrb[0].mxu0 %v620
      %v797 = vpop.f32.mrb[0].mxu0
      %v798 = vadd.f32 %v649, %v797
      %v799 = vpop.f32.mrb[0].mxu0
      %v800 = vpop.f32.mrb[0].mxu0
      %v801 = vadd.f32 %v649, %v800
      %v802 = vpop.f32.mrb[0].mxu0
      %803 = vmatprep.mubr.bf16.mxu0 0
      %804 = vmatmul.mubr.bf16.gmra.mrb[0].mxu0 %v621
      %v805 = vpop.f32.mrb[0].mxu0
      %v806 = vadd.f32 %v649, %v805
      %v807 = vpop.f32.mrb[0].mxu0
      %v808 = vpop.f32.mrb[0].mxu0
      %v809 = vadd.f32 %v649, %v808
      %v810 = vpop.f32.mrb[0].mxu0
      %811 = vmatprep.mubr.bf16.mxu0 0
      %812 = vmatmul.mubr.bf16.gmra.mrb[0].mxu0 %v622
      %v813 = vpop.f32.mrb[0].mxu0
      %v814 = vadd.f32 %v649, %v813
      %v815 = vpop.f32.mrb[0].mxu0
      %v816 = vpop.f32.mrb[0].mxu0
      %v817 = vadd.f32 %v649, %v816
      %v818 = vpop.f32.mrb[0].mxu0
      %819 = vmatprep.mubr.bf16.mxu0 0
      %820 = vmatmul.mubr.bf16.gmra.mrb[0].mxu0 %v623
      %v821 = vpop.f32.mrb[0].mxu0
      %v822 = vadd.f32 %v649, %v821
      %v823 = vpop.f32.mrb[0].mxu0
      %v824 = vpop.f32.mrb[0].mxu0
      %v825 = vadd.f32 %v649, %v824
      %v826 = vpop.f32.mrb[0].mxu0
      %827 = vmatprep.mubr.bf16.mxu0 0
      %828 = vmatmul.mubr.bf16.gmra.mrb[0].mxu0 %v624
      %v829 = vpop.f32.mrb[0].mxu0
      %v830 = vadd.f32 %v649, %v829
      %v831 = vpop.f32.mrb[0].mxu0
      %v832 = vpop.f32.mrb[0].mxu0
      %v833 = vadd.f32 %v649, %v832
      %v834 = vpop.f32.mrb[0].mxu0
      %835 = vmatprep.mubr.bf16.mxu0 0
      %836 = vmatmul.mubr.bf16.gmra.mrb[0].mxu0 %v625
      %v837 = vpop.f32.mrb[0].mxu0
      %v838 = vadd.f32 %v649, %v837
      %v839 = vpop.f32.mrb[0].mxu0
      %v840 = vpop.f32.mrb[0].mxu0
      %v841 = vadd.f32 %v649, %v840
      %v842 = vpop.f32.mrb[0].mxu0
      %843 = vmatprep.mubr.bf16.mxu0 0
      %844 = vmatmul.mubr.bf16.gmra.mrb[0].mxu0 %v626
      %v845 = vpop.f32.mrb[0].mxu0
      %v846 = vadd.f32 %v649, %v845
      %v847 = vpop.f32.mrb[0].mxu0
      %v848 = vpop.f32.mrb[0].mxu0
      %v849 = vadd.f32 %v649, %v848
      %v850 = vpop.f32.mrb[0].mxu0
      %851 = vmatprep.mubr.bf16.mxu0 0
      %852 = vmatmul.mubr.bf16.gmra.mrb[0].mxu0 %v627
      %v853 = vpop.f32.mrb[0].mxu0
      %v854 = vadd.f32 %v649, %v853
      %v855 = vpop.f32.mrb[0].mxu0
      %v856 = vpop.f32.mrb[0].mxu0
      %v857 = vadd.f32 %v649, %v856
      %v858 = vpop.f32.mrb[0].mxu0
      %859 = vdwg.mxu0
      %v860 = vmax.f32 %v734, 0.0
      %v861 = vmax.f32 %v737, 0.0
      %v862 = vmax.f32 %v742, 0.0
      %v863 = vmax.f32 %v745, 0.0
      %v864 = vmax.f32 %v750, 0.0
      %v865 = vmax.f32 %v753, 0.0
      %v866 = vmax.f32 %v758, 0.0
      %v867 = vmax.f32 %v761, 0.0
      %v868 = vmax.f32 %v766, 0.0
      %v869 = vmax.f32 %v769, 0.0
      %v870 = vmax.f32 %v774, 0.0
      %v871 = vmax.f32 %v777, 0.0
      %v872 = vmax.f32 %v782, 0.0
      %v873 = vmax.f32 %v785, 0.0
      %v874 = vmax.f32 %v790, 0.0
      %v875 = vmax.f32 %v793, 0.0
      %v876 = vmax.f32 %v798, 0.0
      %v877 = vmax.f32 %v801, 0.0
      %v878 = vmax.f32 %v806, 0.0
      %v879 = vmax.f32 %v809, 0.0
      %v880 = vmax.f32 %v814, 0.0
      %v881 = vmax.f32 %v817, 0.0
      %v882 = vmax.f32 %v822, 0.0
      %v883 = vmax.f32 %v825, 0.0
      %v884 = vmax.f32 %v830, 0.0
      %v885 = vmax.f32 %v833, 0.0
      %v886 = vmax.f32 %v838, 0.0
      %v887 = vmax.f32 %v841, 0.0
      %v888 = vmax.f32 %v846, 0.0
      %v889 = vmax.f32 %v849, 0.0
      %v890 = vmax.f32 %v854, 0.0
      %v891 = vmax.f32 %v857, 0.0
      %v892 = vpack.c.bf16 %v861, %v860
      %v893 = vpack.c.bf16 %v863, %v862
      %v894 = vpack.c.bf16 %v865, %v864
      %v895 = vpack.c.bf16 %v867, %v866
      %v896 = vpack.c.bf16 %v869, %v868
      %v897 = vpack.c.bf16 %v871, %v870
      %v898 = vpack.c.bf16 %v873, %v872
      %v899 = vpack.c.bf16 %v875, %v874
      %v900 = vpack.c.bf16 %v877, %v876
      %v901 = vpack.c.bf16 %v879, %v878
      %v902 = vpack.c.bf16 %v881, %v880
      %v903 = vpack.c.bf16 %v883, %v882
      %v904 = vpack.c.bf16 %v885, %v884
      %v905 = vpack.c.bf16 %v887, %v886
      %v906 = vpack.c.bf16 %v889, %v888
      %v907 = vpack.c.bf16 %v891, %v890
      %v908 = vld [vmem:[%s5] sm:$0xf]
      %v909 = vld [vmem:[%s5 + $0x4] sm:$0xf]
      %v910 = vld [vmem:[%s5 + $0x8] sm:$0xf]
      %v911 = vld [vmem:[%s5 + $0xc] sm:$0xf]
      %v912 = vld [vmem:[%s5 + $0x10] sm:$0xf]
      %v913 = vld [vmem:[%s5 + $0x14] sm:$0xf]
      %v914 = vld [vmem:[%s5 + $0x18] sm:$0xf]
      %v915 = vld [vmem:[%s5 + $0x1c] sm:$0xf]
      %v916 = vld [vmem:[%s6] sm:$0x1]
      %v918 = vlaneseq
      %v919 = vshrl.u32 %v918, 7
      %v920 = vsub.s32 0, %v919
      %v921 = vrot.slane %v916, %v920
      %v931 = vunpack.c.l.b16 %v908
      %v932 = vunpack.c.l.b16 %v909
      %v933 = vunpack.c.l.b16 %v910
      %v934 = vunpack.c.l.b16 %v911
      %v935 = vunpack.c.l.b16 %v912
      %v936 = vunpack.c.l.b16 %v913
      %v937 = vunpack.c.l.b16 %v914
      %v938 = vunpack.c.l.b16 %v915
      %v939 = vpack.c.b16 %v932, %v931
      %v940 = vpack.c.b16 %v934, %v933
      %v941 = vpack.c.b16 %v936, %v935
      %v942 = vpack.c.b16 %v938, %v937
      %v948 = vsel %vm370, %v892, 0
      %v951 = vsel %vm370, %v893, 0
      %v954 = vsel %vm370, %v894, 0
      %v957 = vsel %vm370, %v895, 0
      %v960 = vsel %vm370, %v896, 0
      %v963 = vsel %vm370, %v897, 0
      %v966 = vsel %vm370, %v898, 0
      %v969 = vsel %vm370, %v899, 0
      %v972 = vsel %vm370, %v900, 0
      %v975 = vsel %vm370, %v901, 0
      %v978 = vsel %vm370, %v902, 0
      %v981 = vsel %vm370, %v903, 0
      %v984 = vsel %vm370, %v904, 0
      %v987 = vsel %vm370, %v905, 0
      %v990 = vsel %vm370, %v906, 0
      %v993 = vsel %vm370, %v907, 0
      %995 = vmatprep.subr.bf16.mxu0 0
      %996 = vmatpush1.bf16.msra.mxu0 %v939
      %997 = vmatprep.subr.bf16.mxu0 0
      %998 = vmatpush1.bf16.msra.mxu0 %v940
      %999 = vmatprep.subr.bf16.mxu0 0
      %1000 = vmatpush1.bf16.msra.mxu0 %v941
      %1001 = vmatprep.subr.bf16.mxu0 0
      %1002 = vmatpush1.bf16.msra.mxu0 %v942
      %1003 = vmatprep.subr.bf16.mxu0 0
      %1004 = vmatpush1.bf16.msra.mxu0 0
      %1005 = vmatprep.subr.bf16.mxu0 0
      %1006 = vmatpush1.bf16.msra.mxu0 0
      %1007 = vmatprep.subr.bf16.mxu0 0
      %1008 = vmatpush1.bf16.msra.mxu0 0
      %1009 = vmatprep.subr.bf16.mxu0 0
      %1010 = vmatpush1.bf16.msra.mxu0 0
      %1011 = vmatprep.subr.bf16.mxu0 0
      %1012 = vmatpush1.bf16.msra.mxu0 0
      %1013 = vmatprep.subr.bf16.mxu0 0
      %1014 = vmatpush1.bf16.msra.mxu0 0
      %1015 = vmatprep.subr.bf16.mxu0 0
      %1016 = vmatpush1.bf16.msra.mxu0 0
      %1017 = vmatprep.subr.bf16.mxu0 0
      %1018 = vmatpush1.bf16.msra.mxu0 0
      %1019 = vmatprep.subr.bf16.mxu0 0
      %1020 = vmatpush1.bf16.msra.mxu0 0
      %1021 = vmatprep.subr.bf16.mxu0 0
      %1022 = vmatpush1.bf16.msra.mxu0 0
      %1023 = vmatprep.subr.bf16.mxu0 0
      %1024 = vmatpush1.bf16.msra.mxu0 0
      %1025 = vmatprep.subr.bf16.mxu0 0
      %1026 = vmatpush1.bf16.msra.mxu0 0
      %1027 = vmatprep.mubr.bf16.mxu0 0
      %1028 = vmatmul.mubr.bf16.gmra.mrb[0].mxu0 %v948
      %v1029 = vpop.f32.mrb[0].mxu0
      %v1030 = vadd.f32 %v921, %v1029
      %v1031 = vpop.f32.mrb[0].mxu0
      %v1032 = vpop.f32.mrb[0].mxu0
      %v1033 = vadd.f32 %v921, %v1032
      %v1034 = vpop.f32.mrb[0].mxu0
      %1035 = vmatprep.mubr.bf16.mxu0 0
      %1036 = vmatmul.mubr.bf16.gmra.mrb[0].mxu0 %v951
      %v1037 = vpop.f32.mrb[0].mxu0
      %v1038 = vadd.f32 %v921, %v1037
      %v1039 = vpop.f32.mrb[0].mxu0
      %v1040 = vpop.f32.mrb[0].mxu0
      %v1041 = vadd.f32 %v921, %v1040
      %v1042 = vpop.f32.mrb[0].mxu0
      %1043 = vmatprep.mubr.bf16.mxu0 0
      %1044 = vmatmul.mubr.bf16.gmra.mrb[0].mxu0 %v954
      %v1045 = vpop.f32.mrb[0].mxu0
      %v1046 = vadd.f32 %v921, %v1045
      %v1047 = vpop.f32.mrb[0].mxu0
      %v1048 = vpop.f32.mrb[0].mxu0
      %v1049 = vadd.f32 %v921, %v1048
      %v1050 = vpop.f32.mrb[0].mxu0
      %1051 = vmatprep.mubr.bf16.mxu0 0
      %1052 = vmatmul.mubr.bf16.gmra.mrb[0].mxu0 %v957
      %v1053 = vpop.f32.mrb[0].mxu0
      %v1054 = vadd.f32 %v921, %v1053
      %v1055 = vpop.f32.mrb[0].mxu0
      %v1056 = vpop.f32.mrb[0].mxu0
      %v1057 = vadd.f32 %v921, %v1056
      %v1058 = vpop.f32.mrb[0].mxu0
      %1059 = vmatprep.mubr.bf16.mxu0 0
      %1060 = vmatmul.mubr.bf16.gmra.mrb[0].mxu0 %v960
      %v1061 = vpop.f32.mrb[0].mxu0
      %v1062 = vadd.f32 %v921, %v1061
      %v1063 = vpop.f32.mrb[0].mxu0
      %v1064 = vpop.f32.mrb[0].mxu0
      %v1065 = vadd.f32 %v921, %v1064
      %v1066 = vpop.f32.mrb[0].mxu0
      %1067 = vmatprep.mubr.bf16.mxu0 0
      %1068 = vmatmul.mubr.bf16.gmra.mrb[0].mxu0 %v963
      %v1069 = vpop.f32.mrb[0].mxu0
      %v1070 = vadd.f32 %v921, %v1069
      %v1071 = vpop.f32.mrb[0].mxu0
      %v1072 = vpop.f32.mrb[0].mxu0
      %v1073 = vadd.f32 %v921, %v1072
      %v1074 = vpop.f32.mrb[0].mxu0
      %1075 = vmatprep.mubr.bf16.mxu0 0
      %1076 = vmatmul.mubr.bf16.gmra.mrb[0].mxu0 %v966
      %v1077 = vpop.f32.mrb[0].mxu0
      %v1078 = vadd.f32 %v921, %v1077
      %v1079 = vpop.f32.mrb[0].mxu0
      %v1080 = vpop.f32.mrb[0].mxu0
      %v1081 = vadd.f32 %v921, %v1080
      %v1082 = vpop.f32.mrb[0].mxu0
      %1083 = vmatprep.mubr.bf16.mxu0 0
      %1084 = vmatmul.mubr.bf16.gmra.mrb[0].mxu0 %v969
      %v1085 = vpop.f32.mrb[0].mxu0
      %v1086 = vadd.f32 %v921, %v1085
      %v1087 = vpop.f32.mrb[0].mxu0
      %v1088 = vpop.f32.mrb[0].mxu0
      %v1089 = vadd.f32 %v921, %v1088
      %v1090 = vpop.f32.mrb[0].mxu0
      %1091 = vmatprep.mubr.bf16.mxu0 0
      %1092 = vmatmul.mubr.bf16.gmra.mrb[0].mxu0 %v972
      %v1093 = vpop.f32.mrb[0].mxu0
      %v1094 = vadd.f32 %v921, %v1093
      %v1095 = vpop.f32.mrb[0].mxu0
      %v1096 = vpop.f32.mrb[0].mxu0
      %v1097 = vadd.f32 %v921, %v1096
      %v1098 = vpop.f32.mrb[0].mxu0
      %1099 = vmatprep.mubr.bf16.mxu0 0
      %1100 = vmatmul.mubr.bf16.gmra.mrb[0].mxu0 %v975
      %v1101 = vpop.f32.mrb[0].mxu0
      %v1102 = vadd.f32 %v921, %v1101
      %v1103 = vpop.f32.mrb[0].mxu0
      %v1104 = vpop.f32.mrb[0].mxu0
      %v1105 = vadd.f32 %v921, %v1104
      %v1106 = vpop.f32.mrb[0].mxu0
      %1107 = vmatprep.mubr.bf16.mxu0 0
      %1108 = vmatmul.mubr.bf16.gmra.mrb[0].mxu0 %v978
      %v1109 = vpop.f32.mrb[0].mxu0
      %v1110 = vadd.f32 %v921, %v1109
      %v1111 = vpop.f32.mrb[0].mxu0
      %v1112 = vpop.f32.mrb[0].mxu0
      %v1113 = vadd.f32 %v921, %v1112
      %v1114 = vpop.f32.mrb[0].mxu0
      %1115 = vmatprep.mubr.bf16.mxu0 0
      %1116 = vmatmul.mubr.bf16.gmra.mrb[0].mxu0 %v981
      %v1117 = vpop.f32.mrb[0].mxu0
      %v1118 = vadd.f32 %v921, %v1117
      %v1119 = vpop.f32.mrb[0].mxu0
      %v1120 = vpop.f32.mrb[0].mxu0
      %v1121 = vadd.f32 %v921, %v1120
      %v1122 = vpop.f32.mrb[0].mxu0
      %1123 = vmatprep.mubr.bf16.mxu0 0
      %1124 = vmatmul.mubr.bf16.gmra.mrb[0].mxu0 %v984
      %v1125 = vpop.f32.mrb[0].mxu0
      %v1126 = vadd.f32 %v921, %v1125
      %v1127 = vpop.f32.mrb[0].mxu0
      %v1128 = vpop.f32.mrb[0].mxu0
      %v1129 = vadd.f32 %v921, %v1128
      %v1130 = vpop.f32.mrb[0].mxu0
      %1131 = vmatprep.mubr.bf16.mxu0 0
      %1132 = vmatmul.mubr.bf16.gmra.mrb[0].mxu0 %v987
      %v1133 = vpop.f32.mrb[0].mxu0
      %v1134 = vadd.f32 %v921, %v1133
      %v1135 = vpop.f32.mrb[0].mxu0
      %v1136 = vpop.f32.mrb[0].mxu0
      %v1137 = vadd.f32 %v921, %v1136
      %v1138 = vpop.f32.mrb[0].mxu0
      %1139 = vmatprep.mubr.bf16.mxu0 0
      %1140 = vmatmul.mubr.bf16.gmra.mrb[0].mxu0 %v990
      %v1141 = vpop.f32.mrb[0].mxu0
      %v1142 = vadd.f32 %v921, %v1141
      %v1143 = vpop.f32.mrb[0].mxu0
      %v1144 = vpop.f32.mrb[0].mxu0
      %v1145 = vadd.f32 %v921, %v1144
      %v1146 = vpop.f32.mrb[0].mxu0
      %1147 = vmatprep.mubr.bf16.mxu0 0
      %1148 = vmatmul.mubr.bf16.gmra.mrb[0].mxu0 %v993
      %v1149 = vpop.f32.mrb[0].mxu0
      %v1150 = vadd.f32 %v921, %v1149
      %v1151 = vpop.f32.mrb[0].mxu0
      %v1152 = vpop.f32.mrb[0].mxu0
      %v1153 = vadd.f32 %v921, %v1152
      %v1154 = vpop.f32.mrb[0].mxu0
      %1155 = vdwg.mxu0
      %v1156 = vmax.f32 %v1030, 0.0
      %v1157 = vmax.f32 %v1033, 0.0
      %v1158 = vmax.f32 %v1038, 0.0
      %v1159 = vmax.f32 %v1041, 0.0
      %v1160 = vmax.f32 %v1046, 0.0
      %v1161 = vmax.f32 %v1049, 0.0
      %v1162 = vmax.f32 %v1054, 0.0
      %v1163 = vmax.f32 %v1057, 0.0
      %v1164 = vmax.f32 %v1062, 0.0
      %v1165 = vmax.f32 %v1065, 0.0
      %v1166 = vmax.f32 %v1070, 0.0
      %v1167 = vmax.f32 %v1073, 0.0
      %v1168 = vmax.f32 %v1078, 0.0
      %v1169 = vmax.f32 %v1081, 0.0
      %v1170 = vmax.f32 %v1086, 0.0
      %v1171 = vmax.f32 %v1089, 0.0
      %v1172 = vmax.f32 %v1094, 0.0
      %v1173 = vmax.f32 %v1097, 0.0
      %v1174 = vmax.f32 %v1102, 0.0
      %v1175 = vmax.f32 %v1105, 0.0
      %v1176 = vmax.f32 %v1110, 0.0
      %v1177 = vmax.f32 %v1113, 0.0
      %v1178 = vmax.f32 %v1118, 0.0
      %v1179 = vmax.f32 %v1121, 0.0
      %v1180 = vmax.f32 %v1126, 0.0
      %v1181 = vmax.f32 %v1129, 0.0
      %v1182 = vmax.f32 %v1134, 0.0
      %v1183 = vmax.f32 %v1137, 0.0
      %v1184 = vmax.f32 %v1142, 0.0
      %v1185 = vmax.f32 %v1145, 0.0
      %v1186 = vmax.f32 %v1150, 0.0
      %v1187 = vmax.f32 %v1153, 0.0
      %vm1188 = vcmask 261120
      %1189 = vst.msk [vmem:[%s280] sm:$0xff] %vm1188, %v1156
      %1190 = vst.msk [vmem:[%s280 + $0x8] sm:$0xff] %vm1188, %v1157
      %1191 = vst.msk [vmem:[%s280 + $0x10] sm:$0xff] %vm1188, %v1158
      %1192 = vst.msk [vmem:[%s280 + $0x18] sm:$0xff] %vm1188, %v1159
      %1193 = vst.msk [vmem:[%s280 + $0x20] sm:$0xff] %vm1188, %v1160
      %1194 = vst.msk [vmem:[%s280 + $0x28] sm:$0xff] %vm1188, %v1161
      %1195 = vst.msk [vmem:[%s280 + $0x30] sm:$0xff] %vm1188, %v1162
      %1196 = vst.msk [vmem:[%s280 + $0x38] sm:$0xff] %vm1188, %v1163
      %1197 = vst.msk [vmem:[%s280 + $0x40] sm:$0xff] %vm1188, %v1164
      %1198 = vst.msk [vmem:[%s280 + $0x48] sm:$0xff] %vm1188, %v1165
      %1199 = vst.msk [vmem:[%s280 + $0x50] sm:$0xff] %vm1188, %v1166
      %1200 = vst.msk [vmem:[%s280 + $0x58] sm:$0xff] %vm1188, %v1167
      %1201 = vst.msk [vmem:[%s280 + $0x60] sm:$0xff] %vm1188, %v1168
      %1202 = vst.msk [vmem:[%s280 + $0x68] sm:$0xff] %vm1188, %v1169
      %1203 = vst.msk [vmem:[%s280 + $0x70] sm:$0xff] %vm1188, %v1170
      %1204 = vst.msk [vmem:[%s280 + $0x78] sm:$0xff] %vm1188, %v1171
      %1205 = vst.msk [vmem:[%s280 + $0x80] sm:$0xff] %vm1188, %v1172
      %1206 = vst.msk [vmem:[%s280 + $0x88] sm:$0xff] %vm1188, %v1173
      %1207 = vst.msk [vmem:[%s280 + $0x90] sm:$0xff] %vm1188, %v1174
      %1208 = vst.msk [vmem:[%s280 + $0x98] sm:$0xff] %vm1188, %v1175
      %1209 = vst.msk [vmem:[%s280 + $0xa0] sm:$0xff] %vm1188, %v1176
      %1210 = vst.msk [vmem:[%s280 + $0xa8] sm:$0xff] %vm1188, %v1177
      %1211 = vst.msk [vmem:[%s280 + $0xb0] sm:$0xff] %vm1188, %v1178
      %1212 = vst.msk [vmem:[%s280 + $0xb8] sm:$0xff] %vm1188, %v1179
      %1213 = vst.msk [vmem:[%s280 + $0xc0] sm:$0xff] %vm1188, %v1180
      %1214 = vst.msk [vmem:[%s280 + $0xc8] sm:$0xff] %vm1188, %v1181
      %1215 = vst.msk [vmem:[%s280 + $0xd0] sm:$0xff] %vm1188, %v1182
      %1216 = vst.msk [vmem:[%s280 + $0xd8] sm:$0xff] %vm1188, %v1183
      %1217 = vst.msk [vmem:[%s280 + $0xe0] sm:$0xff] %vm1188, %v1184
      %1218 = vst.msk [vmem:[%s280 + $0xe8] sm:$0xff] %vm1188, %v1185
      %1219 = vst.msk [vmem:[%s280 + $0xf0] sm:$0xff] %vm1188, %v1186
      %1220 = vst.msk [vmem:[%s280 + $0xf8] sm:$0xff] %vm1188, %v1187
      %s1221 = smul.u32 32, %s18
      %p1222 = scmp.lt.s32.totalorder %s1221, 63
      %s1223 = scalar_select %p1222, %s1221, 63
      %s1224 = smul.addr %s1223, 8
      %s1225 = scalar_lea.vmem %s7, %s1224
      // Predicated region
      $region49: #{tpu_custom_call.1} parent=47 // pred_check
        %p1226 = pneg %p188
      $region50: #{tpu_custom_call.1} parent=47 // pred_check_branch
        %1228 = sbr.rel (%p1226) target = $region52
      $region51: #{tpu_custom_call.1} parent=47 // pred_region
        %s1229 = smul.u32 32, %s18
      $region52: #{tpu_custom_call.1} parent=47 // pred_fallthru
        _
    $region48: #{tpu_custom_call.1} parent=5 // pred_fallthru
      _
    %p1230 = scmp.le.s32.totalorder 2, %s13
    // Predicated region
    $region53: #{tpu_custom_call.1} parent=5 // pred_check
      %p1231 = pneg %p1230
    $region54: #{tpu_custom_call.1} parent=5 // pred_check_branch
      %1233 = sbr.rel (%p1231) target = $region56
    $region55: #{tpu_custom_call.1} parent=5 // pred_region
      %s1234 = ssub.s32 %s13, 2
      // Predicated region
      $region57: #{tpu_custom_call.1} parent=55 // pred_check
        %p1235 = pneg %p194
      $region58: #{tpu_custom_call.1} parent=55 // pred_check_branch
        %1237 = sbr.rel (%p1235) target = $region60
      $region59: #{tpu_custom_call.1} parent=55 // pred_region
        %s1238 = smul.u32 32, %s19
        %p1239 = scmp.lt.s32.totalorder %s1238, 63
        %s1240 = scalar_select %p1239, %s1238, 63
        %s1241 = smul.addr %s1240, 8
        %s1242 = scalar_lea.vmem %s7, %s1241
      $region60: #{tpu_custom_call.1} parent=55 // pred_fallthru
        _
    $region56: #{tpu_custom_call.1} parent=5 // pred_fallthru
      _
  $region6: #{tpu_custom_call.1} parent=0 // loop_footer
    %s17 = sadd.s32 1, %s13
  $region7: #{tpu_custom_call.1} parent=0 // loop_footer_branch
    %12 = sbr.rel target = $region3
  $region8: #{tpu_custom_call.1} parent=0 // loop_exit
    _

</llo_original>
